<compile_context>
chip_gen: v7x
topology: tpu7x:2x2x1
jax: 0.10.0
libtpu: 0.0.40
codegen_flags: <defaults>
</compile_context>

<pallas_src>
import jax
import jax.numpy as jnp
from jax.experimental import pallas as pl
from jax.experimental.pallas import tpu as pltpu


def _gru_kernel(x_ref, h0_ref, wi_ref, wh_ref, bi_ref, bhn_ref,
                out_ref, hout_ref):
    """One grid step processes a chunk of Tc timesteps.

    x_ref   : (Tc*B, I)  time-major flattened input chunk
    h0_ref  : (B, H)     initial hidden state
    wi_ref  : (I, 3H)    packed [W_ir | W_iz | W_in]^T
    wh_ref  : (H, 3H)    packed [W_hr | W_hz | W_hn]^T
    bi_ref  : (1, 3H)    folded [b_ir+b_hr | b_iz+b_hz | b_in]
    bhn_ref : (1, H)     b_hn (kept separate: multiplied by r_t)
    out_ref : (Tc*B, H)  output chunk (time-major flattened)
    hout_ref: (B, H)     resident across the grid -> recurrence carry
    """
    c = pl.program_id(0)
    B, H = hout_ref.shape
    tc = x_ref.shape[0] // B

    @pl.when(c == 0)
    def _():
        hout_ref[...] = h0_ref[...]

    # Hoisted input projection: one fused chunk GEMM (M = Tc*B, N = 3H).
    xp = jnp.dot(x_ref[...], wi_ref[...],
                 preferred_element_type=jnp.float32) + bi_ref[...]

    w_h = wh_ref[...]
    b_hn = bhn_ref[...]
    h = hout_ref[...]

    # Sequential recurrence over the chunk.  tc is a Python int, so this loop
    # fully unrolls at trace time and every slice offset below is static.
    for tt in range(tc):
        gx = xp[tt * B:(tt + 1) * B, :]                             # (B, 3H)
        gh = jnp.dot(h, w_h, preferred_element_type=jnp.float32)    # (B, 3H)
        r = jax.nn.sigmoid(gx[:, :H] + gh[:, :H])
        z = jax.nn.sigmoid(gx[:, H:2 * H] + gh[:, H:2 * H])
        n = jnp.tanh(gx[:, 2 * H:] + r * (gh[:, 2 * H:] + b_hn))
        h = n + z * (h - n)                                         # (1-z)n + zh
        out_ref[pl.ds(tt * B, B), :] = h.astype(out_ref.dtype)

    hout_ref[...] = h


def _pick_chunk(T, B, max_chunk=64):
    """Largest chunk <= max_chunk dividing T with sublane-aligned (Tc*B) rows."""
    best = None
    for tc in range(1, min(T, max_chunk) + 1):
        if T % tc == 0 and (tc * B) % 8 == 0:
            best = tc
    return best if best is not None else T  # tc == T -> block equals full dim


def shared_rnn_gru(x, params, h=None, tc=None):
    """x: (B, T, input_dim) batch_first, h: (1, B, H) or None -> (output, h_out)."""
    B, T, I = x.shape
    H = params["w_hr"].shape[0]
    dtype = jnp.float32
    H3 = 3 * H

    # Packed weights / folded biases (gate order r | z | n).
    w_i_all = jnp.concatenate(
        [params["w_ir"].T, params["w_iz"].T, params["w_in"].T], axis=1)   # (I, 3H)
    w_h_all = jnp.concatenate(
        [params["w_hr"].T, params["w_hz"].T, params["w_hn"].T], axis=1)   # (H, 3H)
    b_i_all = jnp.concatenate(
        [params["b_ir"] + params["b_hr"],
         params["b_iz"] + params["b_hz"],
         params["b_in"]])[None, :]                                        # (1, 3H)
    b_hn = params["b_hn"][None, :]                                        # (1, H)

    h0 = jnp.zeros((B, H), dtype) if h is None else h[0].astype(dtype)

    # Time-major, flattened to 2D: rows = t*B + b.  Keeps the chunked GEMM 2D
    # and every BlockSpec tile-legal regardless of chunk size.
    x2d = jnp.transpose(x, (1, 0, 2)).reshape(T * B, I).astype(dtype)

    if tc is None:
        tc = _pick_chunk(T, B)
    assert T % tc == 0, "chunk size must divide T"
    assert tc == T or (tc * B) % 8 == 0, "chunk rows must be sublane-aligned"
    n_chunks = T // tc
    rows = tc * B

    grid_spec = pltpu.PrefetchScalarGridSpec(
        num_scalar_prefetch=0,
        grid=(n_chunks,),
        in_specs=[
            pl.BlockSpec((rows, I), lambda c: (c, 0)),     # x chunk
            pl.BlockSpec((B, H), lambda c: (0, 0)),        # h0
            pl.BlockSpec((I, H3), lambda c: (0, 0)),       # packed W_i
            pl.BlockSpec((H, H3), lambda c: (0, 0)),       # packed W_h
            pl.BlockSpec((1, H3), lambda c: (0, 0)),       # folded input biases
            pl.BlockSpec((1, H), lambda c: (0, 0)),        # b_hn
        ],
        out_specs=(
            pl.BlockSpec((rows, H), lambda c: (c, 0)),     # output chunk
            pl.BlockSpec((B, H), lambda c: (0, 0)),        # resident h carry
        ),
    )

    out2d, h_last = pl.pallas_call(
        _gru_kernel,
        out_shape=(jax.ShapeDtypeStruct((T * B, H), dtype),
                   jax.ShapeDtypeStruct((B, H), dtype)),
        grid_spec=grid_spec,
        compiler_params=pltpu.CompilerParams(
            dimension_semantics=("arbitrary",)),           # time is sequential
    )(x2d, h0, w_i_all, w_h_all, b_i_all, b_hn)

    output = jnp.transpose(out2d.reshape(T, B, H), (1, 0, 2))   # (B, T, H)
    return output, h_last[None, :, :]                           # (1, B, H)


def init_gru_params(key, input_dim, hidden_dim):
    """PyTorch nn.GRU init: U(-1/sqrt(H), 1/sqrt(H)); gate order r, z, n."""
    k = 1.0 / jnp.sqrt(hidden_dim)
    names_shapes = [
        ("w_ir", (hidden_dim, input_dim)), ("w_iz", (hidden_dim, input_dim)),
        ("w_in", (hidden_dim, input_dim)), ("w_hr", (hidden_dim, hidden_dim)),
        ("w_hz", (hidden_dim, hidden_dim)), ("w_hn", (hidden_dim, hidden_dim)),
        ("b_ir", (hidden_dim,)), ("b_iz", (hidden_dim,)), ("b_in", (hidden_dim,)),
        ("b_hr", (hidden_dim,)), ("b_hz", (hidden_dim,)), ("b_hn", (hidden_dim,)),
    ]
    keys = jax.random.split(key, len(names_shapes))
    return {name: jax.random.uniform(kk, shape, jnp.float32, -k, k)
            for kk, (name, shape) in zip(keys, names_shapes)}


def gru_reference(x, params, h=None):
    """Pure-JAX reference (lax.scan) for correctness checking."""
    B, T, I = x.shape
    H = params["w_hr"].shape[0]
    h0 = jnp.zeros((B, H), jnp.float32) if h is None else h[0].astype(jnp.float32)

    def step(h_prev, x_t):
        i_r = x_t @ params["w_ir"].T + params["b_ir"]
        i_z = x_t @ params["w_iz"].T + params["b_iz"]
        i_n = x_t @ params["w_in"].T + params["b_in"]
        h_r = h_prev @ params["w_hr"].T + params["b_hr"]
        h_z = h_prev @ params["w_hz"].T + params["b_hz"]
        h_n = h_prev @ params["w_hn"].T + params["b_hn"]
        r = jax.nn.sigmoid(i_r + h_r)
        z = jax.nn.sigmoid(i_z + h_z)
        n = jnp.tanh(i_n + r * h_n)
        h_new = (1.0 - z) * n + z * h_prev
        return h_new, h_new

    h_last, ys = jax.lax.scan(step, h0, jnp.transpose(x, (1, 0, 2)))
    return jnp.transpose(ys, (1, 0, 2)), h_last[None, :, :]


if __name__ == "__main__":
    B, T, INPUT_DIM, HIDDEN_DIM = 2, 8, 4, 32

    key = jax.random.PRNGKey(0)
    kx, kp, kh = jax.random.split(key, 3)
    x = jax.random.normal(kx, (B, T, INPUT_DIM), jnp.float32)
    params = init_gru_params(kp, INPUT_DIM, HIDDEN_DIM)

    ref_out, ref_h = gru_reference(x, params, h=None)

    # Default chunking (single chunk for T=8) and an explicit multi-chunk run
    # that exercises the cross-chunk hidden-state carry.
    for tc in (None, 4):
        output, h_out = shared_rnn_gru(x, params, h=None, tc=tc)
        jax.block_until_ready((output, h_out))
        assert output.shape == (B, T, HIDDEN_DIM)
        assert h_out.shape == (1, B, HIDDEN_DIM)
        assert jnp.allclose(output, ref_out, atol=1e-4, rtol=1e-4)
        assert jnp.allclose(h_out, ref_h, atol=1e-4, rtol=1e-4)

    # Non-zero initial hidden state path (h argument of forward()).
    h_init = jax.random.normal(kh, (1, B, HIDDEN_DIM), jnp.float32)
    out2, h2 = shared_rnn_gru(x, params, h=h_init, tc=4)
    ref2_out, ref2_h = gru_reference(x, params, h=h_init)
    jax.block_until_ready((out2, h2))
    assert jnp.allclose(out2, ref2_out, atol=1e-4, rtol=1e-4)
    assert jnp.allclose(h2, ref2_h, atol=1e-4, rtol=1e-4)

    # TODO(synk): rnn_type='lstm' branch not implemented; module default is GRU.
    print("KERNEL_OK")
</pallas_src>

<mosaic_0001>
module attributes {stable_mosaic.version = 11 : i64} {
  func.func @_gru_kernel(%arg0: i32, %arg1: memref<16x4xf32, #tpu.memory_space<vmem>>, %arg2: memref<2x32xf32, #tpu.memory_space<vmem>>, %arg3: memref<4x96xf32, #tpu.memory_space<vmem>>, %arg4: memref<32x96xf32, #tpu.memory_space<vmem>>, %arg5: memref<1x96xf32, #tpu.memory_space<vmem>>, %arg6: memref<1x32xf32, #tpu.memory_space<vmem>>, %arg7: memref<16x32xf32, #tpu.memory_space<vmem>>, %arg8: memref<2x32xf32, #tpu.memory_space<vmem>>) attributes {dimension_semantics = [#tpu.dimension_semantics<arbitrary>], iteration_bounds = array<i64: 1>, scalar_prefetch = 0 : i64, scratch_operands = 0 : i64, tpu.core_type = #tpu.core_type<tc>, window_params = [{transform_indices = @transform_0, window_bounds = array<i64: 16, 4>}, {pipeline_mode = #tpu.pipeline_mode<synchronous>, transform_indices = @transform_1, window_bounds = array<i64: 2, 32>}, {pipeline_mode = #tpu.pipeline_mode<synchronous>, transform_indices = @transform_2, window_bounds = array<i64: 4, 96>}, {pipeline_mode = #tpu.pipeline_mode<synchronous>, transform_indices = @transform_3, window_bounds = array<i64: 32, 96>}, {pipeline_mode = #tpu.pipeline_mode<synchronous>, transform_indices = @transform_4, window_bounds = array<i64: 1, 96>}, {pipeline_mode = #tpu.pipeline_mode<synchronous>, transform_indices = @transform_5, window_bounds = array<i64: 1, 32>}, {transform_indices = @transform_6, window_bounds = array<i64: 16, 32>}, {pipeline_mode = #tpu.pipeline_mode<synchronous>, transform_indices = @transform_7, window_bounds = array<i64: 2, 32>}]} {
    %c0_i32 = arith.constant 0 : i32
    %0 = arith.cmpi eq, %arg0, %c0_i32 : i32
    %1 = arith.extui %0 : i1 to i32
    %c0_i32_0 = arith.constant 0 : i32
    %2 = arith.cmpi ne, %1, %c0_i32_0 : i32
    scf.if %2 {
      %c0_47 = arith.constant 0 : index
      %c0_48 = arith.constant 0 : index
      %245 = vector.load %arg2[%c0_47, %c0_48] : memref<2x32xf32, #tpu.memory_space<vmem>>, vector<2x32xf32>
      %c0_49 = arith.constant 0 : index
      %c0_50 = arith.constant 0 : index
      %246 = vector.load %arg8[%c0_49, %c0_50] : memref<2x32xf32, #tpu.memory_space<vmem>>, vector<2x32xf32>
      tpu.vector_store %arg8[%c0_49, %c0_50], %245 {strides = array<i32>} : memref<2x32xf32, #tpu.memory_space<vmem>>, vector<2x32xf32>,
    } else {
    }
    %c0 = arith.constant 0 : index
    %c0_1 = arith.constant 0 : index
    %3 = vector.load %arg1[%c0, %c0_1] : memref<16x4xf32, #tpu.memory_space<vmem>>, vector<16x4xf32>
    %c0_2 = arith.constant 0 : index
    %c0_3 = arith.constant 0 : index
    %4 = vector.load %arg3[%c0_2, %c0_3] : memref<4x96xf32, #tpu.memory_space<vmem>>, vector<4x96xf32>
    %cst = arith.constant dense<0.000000e+00> : vector<16x96xf32>
    %5 = tpu.matmul %3, %4, %cst {dimension_numbers = #tpu.dot_dimension_numbers<[1], [0], [0], [1], [0, 0, 1, 1], [], []>} : vector<16x4xf32>, vector<4x96xf32>, vector<16x96xf32> -> vector<16x96xf32>
    %c0_4 = arith.constant 0 : index
    %c0_5 = arith.constant 0 : index
    %6 = vector.load %arg5[%c0_4, %c0_5] : memref<1x96xf32, #tpu.memory_space<vmem>>, vector<1x96xf32>
    %7 = vector.broadcast %6 : vector<1x96xf32> to vector<16x96xf32>
    %8 = arith.addf %5, %7 : vector<16x96xf32>
    %c0_6 = arith.constant 0 : index
    %c0_7 = arith.constant 0 : index
    %9 = vector.load %arg4[%c0_6, %c0_7] : memref<32x96xf32, #tpu.memory_space<vmem>>, vector<32x96xf32>
    %c0_8 = arith.constant 0 : index
    %c0_9 = arith.constant 0 : index
    %10 = vector.load %arg6[%c0_8, %c0_9] : memref<1x32xf32, #tpu.memory_space<vmem>>, vector<1x32xf32>
    %c0_10 = arith.constant 0 : index
    %c0_11 = arith.constant 0 : index
    %11 = vector.load %arg8[%c0_10, %c0_11] : memref<2x32xf32, #tpu.memory_space<vmem>>, vector<2x32xf32>
    %12 = vector.extract_strided_slice %8 {offsets = [0, 0], sizes = [2, 96], strides = [1, 1]} : vector<16x96xf32> to vector<2x96xf32>
    %cst_12 = arith.constant dense<0.000000e+00> : vector<2x96xf32>
    %13 = tpu.matmul %11, %9, %cst_12 {dimension_numbers = #tpu.dot_dimension_numbers<[1], [0], [0], [1], [0, 0, 1, 1], [], []>} : vector<2x32xf32>, vector<32x96xf32>, vector<2x96xf32> -> vector<2x96xf32>
    %14 = vector.extract_strided_slice %12 {offsets = [0, 0], sizes = [2, 32], strides = [1, 1]} : vector<2x96xf32> to vector<2x32xf32>
    %15 = vector.extract_strided_slice %13 {offsets = [0, 0], sizes = [2, 32], strides = [1, 1]} : vector<2x96xf32> to vector<2x32xf32>
    %16 = arith.addf %14, %15 : vector<2x32xf32>
    %17 = arith.negf %16 : vector<2x32xf32>
    %18 = math.exp %17 : vector<2x32xf32>
    %cst_13 = arith.constant 1.000000e+00 : f32
    %19 = vector.broadcast %cst_13 : f32 to vector<2x32xf32>
    %20 = arith.addf %19, %18 : vector<2x32xf32>
    %21 = arith.divf %19, %20 : vector<2x32xf32>
    %22 = vector.extract_strided_slice %12 {offsets = [0, 32], sizes = [2, 32], strides = [1, 1]} : vector<2x96xf32> to vector<2x32xf32>
    %23 = vector.extract_strided_slice %13 {offsets = [0, 32], sizes = [2, 32], strides = [1, 1]} : vector<2x96xf32> to vector<2x32xf32>
    %24 = arith.addf %22, %23 : vector<2x32xf32>
    %25 = arith.negf %24 : vector<2x32xf32>
    %26 = math.exp %25 : vector<2x32xf32>
    %cst_14 = arith.constant 1.000000e+00 : f32
    %27 = vector.broadcast %cst_14 : f32 to vector<2x32xf32>
    %28 = arith.addf %27, %26 : vector<2x32xf32>
    %29 = arith.divf %27, %28 : vector<2x32xf32>
    %30 = vector.extract_strided_slice %12 {offsets = [0, 64], sizes = [2, 32], strides = [1, 1]} : vector<2x96xf32> to vector<2x32xf32>
    %31 = vector.extract_strided_slice %13 {offsets = [0, 64], sizes = [2, 32], strides = [1, 1]} : vector<2x96xf32> to vector<2x32xf32>
    %32 = vector.broadcast %10 : vector<1x32xf32> to vector<2x32xf32>
    %33 = arith.addf %31, %32 : vector<2x32xf32>
    %34 = arith.mulf %21, %33 : vector<2x32xf32>
    %35 = arith.addf %30, %34 : vector<2x32xf32>
    %36 = math.tanh %35 : vector<2x32xf32>
    %37 = arith.subf %11, %36 : vector<2x32xf32>
    %38 = arith.mulf %29, %37 : vector<2x32xf32>
    %39 = arith.addf %36, %38 : vector<2x32xf32>
    %c0_15 = arith.constant 0 : index
    %c0_16 = arith.constant 0 : index
    %40 = vector.load %arg7[%c0_15, %c0_16] : memref<16x32xf32, #tpu.memory_space<vmem>>, vector<2x32xf32>
    tpu.vector_store %arg7[%c0_15, %c0_16], %39 {strides = array<i32>} : memref<16x32xf32, #tpu.memory_space<vmem>>, vector<2x32xf32>,
    %41 = vector.extract_strided_slice %8 {offsets = [2, 0], sizes = [2, 96], strides = [1, 1]} : vector<16x96xf32> to vector<2x96xf32>
    %cst_17 = arith.constant dense<0.000000e+00> : vector<2x96xf32>
    %42 = tpu.matmul %39, %9, %cst_17 {dimension_numbers = #tpu.dot_dimension_numbers<[1], [0], [0], [1], [0, 0, 1, 1], [], []>} : vector<2x32xf32>, vector<32x96xf32>, vector<2x96xf32> -> vector<2x96xf32>
    %43 = vector.extract_strided_slice %41 {offsets = [0, 0], sizes = [2, 32], strides = [1, 1]} : vector<2x96xf32> to vector<2x32xf32>
    %44 = vector.extract_strided_slice %42 {offsets = [0, 0], sizes = [2, 32], strides = [1, 1]} : vector<2x96xf32> to vector<2x32xf32>
    %45 = arith.addf %43, %44 : vector<2x32xf32>
    %46 = arith.negf %45 : vector<2x32xf32>
    %47 = math.exp %46 : vector<2x32xf32>
    %cst_18 = arith.constant 1.000000e+00 : f32
    %48 = vector.broadcast %cst_18 : f32 to vector<2x32xf32>
    %49 = arith.addf %48, %47 : vector<2x32xf32>
    %50 = arith.divf %48, %49 : vector<2x32xf32>
    %51 = vector.extract_strided_slice %41 {offsets = [0, 32], sizes = [2, 32], strides = [1, 1]} : vector<2x96xf32> to vector<2x32xf32>
    %52 = vector.extract_strided_slice %42 {offsets = [0, 32], sizes = [2, 32], strides = [1, 1]} : vector<2x96xf32> to vector<2x32xf32>
    %53 = arith.addf %51, %52 : vector<2x32xf32>
    %54 = arith.negf %53 : vector<2x32xf32>
    %55 = math.exp %54 : vector<2x32xf32>
    %cst_19 = arith.constant 1.000000e+00 : f32
    %56 = vector.broadcast %cst_19 : f32 to vector<2x32xf32>
    %57 = arith.addf %56, %55 : vector<2x32xf32>
    %58 = arith.divf %56, %57 : vector<2x32xf32>
    %59 = vector.extract_strided_slice %41 {offsets = [0, 64], sizes = [2, 32], strides = [1, 1]} : vector<2x96xf32> to vector<2x32xf32>
    %60 = vector.extract_strided_slice %42 {offsets = [0, 64], sizes = [2, 32], strides = [1, 1]} : vector<2x96xf32> to vector<2x32xf32>
    %61 = vector.broadcast %10 : vector<1x32xf32> to vector<2x32xf32>
    %62 = arith.addf %60, %61 : vector<2x32xf32>
    %63 = arith.mulf %50, %62 : vector<2x32xf32>
    %64 = arith.addf %59, %63 : vector<2x32xf32>
    %65 = math.tanh %64 : vector<2x32xf32>
    %66 = arith.subf %39, %65 : vector<2x32xf32>
    %67 = arith.mulf %58, %66 : vector<2x32xf32>
    %68 = arith.addf %65, %67 : vector<2x32xf32>
    %c2 = arith.constant 2 : index
    %c0_20 = arith.constant 0 : index
    %69 = vector.load %arg7[%c2, %c0_20] : memref<16x32xf32, #tpu.memory_space<vmem>>, vector<2x32xf32>
    tpu.vector_store %arg7[%c2, %c0_20], %68 {strides = array<i32>} : memref<16x32xf32, #tpu.memory_space<vmem>>, vector<2x32xf32>,
    %70 = vector.extract_strided_slice %8 {offsets = [4, 0], sizes = [2, 96], strides = [1, 1]} : vector<16x96xf32> to vector<2x96xf32>
    %cst_21 = arith.constant dense<0.000000e+00> : vector<2x96xf32>
    %71 = tpu.matmul %68, %9, %cst_21 {dimension_numbers = #tpu.dot_dimension_numbers<[1], [0], [0], [1], [0, 0, 1, 1], [], []>} : vector<2x32xf32>, vector<32x96xf32>, vector<2x96xf32> -> vector<2x96xf32>
    %72 = vector.extract_strided_slice %70 {offsets = [0, 0], sizes = [2, 32], strides = [1, 1]} : vector<2x96xf32> to vector<2x32xf32>
    %73 = vector.extract_strided_slice %71 {offsets = [0, 0], sizes = [2, 32], strides = [1, 1]} : vector<2x96xf32> to vector<2x32xf32>
    %74 = arith.addf %72, %73 : vector<2x32xf32>
    %75 = arith.negf %74 : vector<2x32xf32>
    %76 = math.exp %75 : vector<2x32xf32>
    %cst_22 = arith.constant 1.000000e+00 : f32
    %77 = vector.broadcast %cst_22 : f32 to vector<2x32xf32>
    %78 = arith.addf %77, %76 : vector<2x32xf32>
    %79 = arith.divf %77, %78 : vector<2x32xf32>
    %80 = vector.extract_strided_slice %70 {offsets = [0, 32], sizes = [2, 32], strides = [1, 1]} : vector<2x96xf32> to vector<2x32xf32>
    %81 = vector.extract_strided_slice %71 {offsets = [0, 32], sizes = [2, 32], strides = [1, 1]} : vector<2x96xf32> to vector<2x32xf32>
    %82 = arith.addf %80, %81 : vector<2x32xf32>
    %83 = arith.negf %82 : vector<2x32xf32>
    %84 = math.exp %83 : vector<2x32xf32>
    %cst_23 = arith.constant 1.000000e+00 : f32
    %85 = vector.broadcast %cst_23 : f32 to vector<2x32xf32>
    %86 = arith.addf %85, %84 : vector<2x32xf32>
    %87 = arith.divf %85, %86 : vector<2x32xf32>
    %88 = vector.extract_strided_slice %70 {offsets = [0, 64], sizes = [2, 32], strides = [1, 1]} : vector<2x96xf32> to vector<2x32xf32>
    %89 = vector.extract_strided_slice %71 {offsets = [0, 64], sizes = [2, 32], strides = [1, 1]} : vector<2x96xf32> to vector<2x32xf32>
    %90 = vector.broadcast %10 : vector<1x32xf32> to vector<2x32xf32>
    %91 = arith.addf %89, %90 : vector<2x32xf32>
    %92 = arith.mulf %79, %91 : vector<2x32xf32>
    %93 = arith.addf %88, %92 : vector<2x32xf32>
    %94 = math.tanh %93 : vector<2x32xf32>
    %95 = arith.subf %68, %94 : vector<2x32xf32>
    %96 = arith.mulf %87, %95 : vector<2x32xf32>
    %97 = arith.addf %94, %96 : vector<2x32xf32>
    %c4 = arith.constant 4 : index
    %c0_24 = arith.constant 0 : index
    %98 = vector.load %arg7[%c4, %c0_24] : memref<16x32xf32, #tpu.memory_space<vmem>>, vector<2x32xf32>
    tpu.vector_store %arg7[%c4, %c0_24], %97 {strides = array<i32>} : memref<16x32xf32, #tpu.memory_space<vmem>>, vector<2x32xf32>,
    %99 = vector.extract_strided_slice %8 {offsets = [6, 0], sizes = [2, 96], strides = [1, 1]} : vector<16x96xf32> to vector<2x96xf32>
    %cst_25 = arith.constant dense<0.000000e+00> : vector<2x96xf32>
    %100 = tpu.matmul %97, %9, %cst_25 {dimension_numbers = #tpu.dot_dimension_numbers<[1], [0], [0], [1], [0, 0, 1, 1], [], []>} : vector<2x32xf32>, vector<32x96xf32>, vector<2x96xf32> -> vector<2x96xf32>
    %101 = vector.extract_strided_slice %99 {offsets = [0, 0], sizes = [2, 32], strides = [1, 1]} : vector<2x96xf32> to vector<2x32xf32>
    %102 = vector.extract_strided_slice %100 {offsets = [0, 0], sizes = [2, 32], strides = [1, 1]} : vector<2x96xf32> to vector<2x32xf32>
    %103 = arith.addf %101, %102 : vector<2x32xf32>
    %104 = arith.negf %103 : vector<2x32xf32>
    %105 = math.exp %104 : vector<2x32xf32>
    %cst_26 = arith.constant 1.000000e+00 : f32
    %106 = vector.broadcast %cst_26 : f32 to vector<2x32xf32>
    %107 = arith.addf %106, %105 : vector<2x32xf32>
    %108 = arith.divf %106, %107 : vector<2x32xf32>
    %109 = vector.extract_strided_slice %99 {offsets = [0, 32], sizes = [2, 32], strides = [1, 1]} : vector<2x96xf32> to vector<2x32xf32>
    %110 = vector.extract_strided_slice %100 {offsets = [0, 32], sizes = [2, 32], strides = [1, 1]} : vector<2x96xf32> to vector<2x32xf32>
    %111 = arith.addf %109, %110 : vector<2x32xf32>
    %112 = arith.negf %111 : vector<2x32xf32>
    %113 = math.exp %112 : vector<2x32xf32>
    %cst_27 = arith.constant 1.000000e+00 : f32
    %114 = vector.broadcast %cst_27 : f32 to vector<2x32xf32>
    %115 = arith.addf %114, %113 : vector<2x32xf32>
    %116 = arith.divf %114, %115 : vector<2x32xf32>
    %117 = vector.extract_strided_slice %99 {offsets = [0, 64], sizes = [2, 32], strides = [1, 1]} : vector<2x96xf32> to vector<2x32xf32>
    %118 = vector.extract_strided_slice %100 {offsets = [0, 64], sizes = [2, 32], strides = [1, 1]} : vector<2x96xf32> to vector<2x32xf32>
    %119 = vector.broadcast %10 : vector<1x32xf32> to vector<2x32xf32>
    %120 = arith.addf %118, %119 : vector<2x32xf32>
    %121 = arith.mulf %108, %120 : vector<2x32xf32>
    %122 = arith.addf %117, %121 : vector<2x32xf32>
    %123 = math.tanh %122 : vector<2x32xf32>
    %124 = arith.subf %97, %123 : vector<2x32xf32>
    %125 = arith.mulf %116, %124 : vector<2x32xf32>
    %126 = arith.addf %123, %125 : vector<2x32xf32>
    %c6 = arith.constant 6 : index
    %c0_28 = arith.constant 0 : index
    %127 = vector.load %arg7[%c6, %c0_28] : memref<16x32xf32, #tpu.memory_space<vmem>>, vector<2x32xf32>
    tpu.vector_store %arg7[%c6, %c0_28], %126 {strides = array<i32>} : memref<16x32xf32, #tpu.memory_space<vmem>>, vector<2x32xf32>,
    %128 = vector.extract_strided_slice %8 {offsets = [8, 0], sizes = [2, 96], strides = [1, 1]} : vector<16x96xf32> to vector<2x96xf32>
    %cst_29 = arith.constant dense<0.000000e+00> : vector<2x96xf32>
    %129 = tpu.matmul %126, %9, %cst_29 {dimension_numbers = #tpu.dot_dimension_numbers<[1], [0], [0], [1], [0, 0, 1, 1], [], []>} : vector<2x32xf32>, vector<32x96xf32>, vector<2x96xf32> -> vector<2x96xf32>
    %130 = vector.extract_strided_slice %128 {offsets = [0, 0], sizes = [2, 32], strides = [1, 1]} : vector<2x96xf32> to vector<2x32xf32>
    %131 = vector.extract_strided_slice %129 {offsets = [0, 0], sizes = [2, 32], strides = [1, 1]} : vector<2x96xf32> to vector<2x32xf32>
    %132 = arith.addf %130, %131 : vector<2x32xf32>
    %133 = arith.negf %132 : vector<2x32xf32>
    %134 = math.exp %133 : vector<2x32xf32>
    %cst_30 = arith.constant 1.000000e+00 : f32
    %135 = vector.broadcast %cst_30 : f32 to vector<2x32xf32>
    %136 = arith.addf %135, %134 : vector<2x32xf32>
    %137 = arith.divf %135, %136 : vector<2x32xf32>
    %138 = vector.extract_strided_slice %128 {offsets = [0, 32], sizes = [2, 32], strides = [1, 1]} : vector<2x96xf32> to vector<2x32xf32>
    %139 = vector.extract_strided_slice %129 {offsets = [0, 32], sizes = [2, 32], strides = [1, 1]} : vector<2x96xf32> to vector<2x32xf32>
    %140 = arith.addf %138, %139 : vector<2x32xf32>
    %141 = arith.negf %140 : vector<2x32xf32>
    %142 = math.exp %141 : vector<2x32xf32>
    %cst_31 = arith.constant 1.000000e+00 : f32
    %143 = vector.broadcast %cst_31 : f32 to vector<2x32xf32>
    %144 = arith.addf %143, %142 : vector<2x32xf32>
    %145 = arith.divf %143, %144 : vector<2x32xf32>
    %146 = vector.extract_strided_slice %128 {offsets = [0, 64], sizes = [2, 32], strides = [1, 1]} : vector<2x96xf32> to vector<2x32xf32>
    %147 = vector.extract_strided_slice %129 {offsets = [0, 64], sizes = [2, 32], strides = [1, 1]} : vector<2x96xf32> to vector<2x32xf32>
    %148 = vector.broadcast %10 : vector<1x32xf32> to vector<2x32xf32>
    %149 = arith.addf %147, %148 : vector<2x32xf32>
    %150 = arith.mulf %137, %149 : vector<2x32xf32>
    %151 = arith.addf %146, %150 : vector<2x32xf32>
    %152 = math.tanh %151 : vector<2x32xf32>
    %153 = arith.subf %126, %152 : vector<2x32xf32>
    %154 = arith.mulf %145, %153 : vector<2x32xf32>
    %155 = arith.addf %152, %154 : vector<2x32xf32>
    %c8 = arith.constant 8 : index
    %c0_32 = arith.constant 0 : index
    %156 = vector.load %arg7[%c8, %c0_32] : memref<16x32xf32, #tpu.memory_space<vmem>>, vector<2x32xf32>
    tpu.vector_store %arg7[%c8, %c0_32], %155 {strides = array<i32>} : memref<16x32xf32, #tpu.memory_space<vmem>>, vector<2x32xf32>,
    %157 = vector.extract_strided_slice %8 {offsets = [10, 0], sizes = [2, 96], strides = [1, 1]} : vector<16x96xf32> to vector<2x96xf32>
    %cst_33 = arith.constant dense<0.000000e+00> : vector<2x96xf32>
    %158 = tpu.matmul %155, %9, %cst_33 {dimension_numbers = #tpu.dot_dimension_numbers<[1], [0], [0], [1], [0, 0, 1, 1], [], []>} : vector<2x32xf32>, vector<32x96xf32>, vector<2x96xf32> -> vector<2x96xf32>
    %159 = vector.extract_strided_slice %157 {offsets = [0, 0], sizes = [2, 32], strides = [1, 1]} : vector<2x96xf32> to vector<2x32xf32>
    %160 = vector.extract_strided_slice %158 {offsets = [0, 0], sizes = [2, 32], strides = [1, 1]} : vector<2x96xf32> to vector<2x32xf32>
    %161 = arith.addf %159, %160 : vector<2x32xf32>
    %162 = arith.negf %161 : vector<2x32xf32>
    %163 = math.exp %162 : vector<2x32xf32>
    %cst_34 = arith.constant 1.000000e+00 : f32
    %164 = vector.broadcast %cst_34 : f32 to vector<2x32xf32>
    %165 = arith.addf %164, %163 : vector<2x32xf32>
    %166 = arith.divf %164, %165 : vector<2x32xf32>
    %167 = vector.extract_strided_slice %157 {offsets = [0, 32], sizes = [2, 32], strides = [1, 1]} : vector<2x96xf32> to vector<2x32xf32>
    %168 = vector.extract_strided_slice %158 {offsets = [0, 32], sizes = [2, 32], strides = [1, 1]} : vector<2x96xf32> to vector<2x32xf32>
    %169 = arith.addf %167, %168 : vector<2x32xf32>
    %170 = arith.negf %169 : vector<2x32xf32>
    %171 = math.exp %170 : vector<2x32xf32>
    %cst_35 = arith.constant 1.000000e+00 : f32
    %172 = vector.broadcast %cst_35 : f32 to vector<2x32xf32>
    %173 = arith.addf %172, %171 : vector<2x32xf32>
    %174 = arith.divf %172, %173 : vector<2x32xf32>
    %175 = vector.extract_strided_slice %157 {offsets = [0, 64], sizes = [2, 32], strides = [1, 1]} : vector<2x96xf32> to vector<2x32xf32>
    %176 = vector.extract_strided_slice %158 {offsets = [0, 64], sizes = [2, 32], strides = [1, 1]} : vector<2x96xf32> to vector<2x32xf32>
    %177 = vector.broadcast %10 : vector<1x32xf32> to vector<2x32xf32>
    %178 = arith.addf %176, %177 : vector<2x32xf32>
    %179 = arith.mulf %166, %178 : vector<2x32xf32>
    %180 = arith.addf %175, %179 : vector<2x32xf32>
    %181 = math.tanh %180 : vector<2x32xf32>
    %182 = arith.subf %155, %181 : vector<2x32xf32>
    %183 = arith.mulf %174, %182 : vector<2x32xf32>
    %184 = arith.addf %181, %183 : vector<2x32xf32>
    %c10 = arith.constant 10 : index
    %c0_36 = arith.constant 0 : index
    %185 = vector.load %arg7[%c10, %c0_36] : memref<16x32xf32, #tpu.memory_space<vmem>>, vector<2x32xf32>
    tpu.vector_store %arg7[%c10, %c0_36], %184 {strides = array<i32>} : memref<16x32xf32, #tpu.memory_space<vmem>>, vector<2x32xf32>,
    %186 = vector.extract_strided_slice %8 {offsets = [12, 0], sizes = [2, 96], strides = [1, 1]} : vector<16x96xf32> to vector<2x96xf32>
    %cst_37 = arith.constant dense<0.000000e+00> : vector<2x96xf32>
    %187 = tpu.matmul %184, %9, %cst_37 {dimension_numbers = #tpu.dot_dimension_numbers<[1], [0], [0], [1], [0, 0, 1, 1], [], []>} : vector<2x32xf32>, vector<32x96xf32>, vector<2x96xf32> -> vector<2x96xf32>
    %188 = vector.extract_strided_slice %186 {offsets = [0, 0], sizes = [2, 32], strides = [1, 1]} : vector<2x96xf32> to vector<2x32xf32>
    %189 = vector.extract_strided_slice %187 {offsets = [0, 0], sizes = [2, 32], strides = [1, 1]} : vector<2x96xf32> to vector<2x32xf32>
    %190 = arith.addf %188, %189 : vector<2x32xf32>
    %191 = arith.negf %190 : vector<2x32xf32>
    %192 = math.exp %191 : vector<2x32xf32>
    %cst_38 = arith.constant 1.000000e+00 : f32
    %193 = vector.broadcast %cst_38 : f32 to vector<2x32xf32>
    %194 = arith.addf %193, %192 : vector<2x32xf32>
    %195 = arith.divf %193, %194 : vector<2x32xf32>
    %196 = vector.extract_strided_slice %186 {offsets = [0, 32], sizes = [2, 32], strides = [1, 1]} : vector<2x96xf32> to vector<2x32xf32>
    %197 = vector.extract_strided_slice %187 {offsets = [0, 32], sizes = [2, 32], strides = [1, 1]} : vector<2x96xf32> to vector<2x32xf32>
    %198 = arith.addf %196, %197 : vector<2x32xf32>
    %199 = arith.negf %198 : vector<2x32xf32>
    %200 = math.exp %199 : vector<2x32xf32>
    %cst_39 = arith.constant 1.000000e+00 : f32
    %201 = vector.broadcast %cst_39 : f32 to vector<2x32xf32>
    %202 = arith.addf %201, %200 : vector<2x32xf32>
    %203 = arith.divf %201, %202 : vector<2x32xf32>
    %204 = vector.extract_strided_slice %186 {offsets = [0, 64], sizes = [2, 32], strides = [1, 1]} : vector<2x96xf32> to vector<2x32xf32>
    %205 = vector.extract_strided_slice %187 {offsets = [0, 64], sizes = [2, 32], strides = [1, 1]} : vector<2x96xf32> to vector<2x32xf32>
    %206 = vector.broadcast %10 : vector<1x32xf32> to vector<2x32xf32>
    %207 = arith.addf %205, %206 : vector<2x32xf32>
    %208 = arith.mulf %195, %207 : vector<2x32xf32>
    %209 = arith.addf %204, %208 : vector<2x32xf32>
    %210 = math.tanh %209 : vector<2x32xf32>
    %211 = arith.subf %184, %210 : vector<2x32xf32>
    %212 = arith.mulf %203, %211 : vector<2x32xf32>
    %213 = arith.addf %210, %212 : vector<2x32xf32>
    %c12 = arith.constant 12 : index
    %c0_40 = arith.constant 0 : index
    %214 = vector.load %arg7[%c12, %c0_40] : memref<16x32xf32, #tpu.memory_space<vmem>>, vector<2x32xf32>
    tpu.vector_store %arg7[%c12, %c0_40], %213 {strides = array<i32>} : memref<16x32xf32, #tpu.memory_space<vmem>>, vector<2x32xf32>,
    %215 = vector.extract_strided_slice %8 {offsets = [14, 0], sizes = [2, 96], strides = [1, 1]} : vector<16x96xf32> to vector<2x96xf32>
    %cst_41 = arith.constant dense<0.000000e+00> : vector<2x96xf32>
    %216 = tpu.matmul %213, %9, %cst_41 {dimension_numbers = #tpu.dot_dimension_numbers<[1], [0], [0], [1], [0, 0, 1, 1], [], []>} : vector<2x32xf32>, vector<32x96xf32>, vector<2x96xf32> -> vector<2x96xf32>
    %217 = vector.extract_strided_slice %215 {offsets = [0, 0], sizes = [2, 32], strides = [1, 1]} : vector<2x96xf32> to vector<2x32xf32>
    %218 = vector.extract_strided_slice %216 {offsets = [0, 0], sizes = [2, 32], strides = [1, 1]} : vector<2x96xf32> to vector<2x32xf32>
    %219 = arith.addf %217, %218 : vector<2x32xf32>
    %220 = arith.negf %219 : vector<2x32xf32>
    %221 = math.exp %220 : vector<2x32xf32>
    %cst_42 = arith.constant 1.000000e+00 : f32
    %222 = vector.broadcast %cst_42 : f32 to vector<2x32xf32>
    %223 = arith.addf %222, %221 : vector<2x32xf32>
    %224 = arith.divf %222, %223 : vector<2x32xf32>
    %225 = vector.extract_strided_slice %215 {offsets = [0, 32], sizes = [2, 32], strides = [1, 1]} : vector<2x96xf32> to vector<2x32xf32>
    %226 = vector.extract_strided_slice %216 {offsets = [0, 32], sizes = [2, 32], strides = [1, 1]} : vector<2x96xf32> to vector<2x32xf32>
    %227 = arith.addf %225, %226 : vector<2x32xf32>
    %228 = arith.negf %227 : vector<2x32xf32>
    %229 = math.exp %228 : vector<2x32xf32>
    %cst_43 = arith.constant 1.000000e+00 : f32
    %230 = vector.broadcast %cst_43 : f32 to vector<2x32xf32>
    %231 = arith.addf %230, %229 : vector<2x32xf32>
    %232 = arith.divf %230, %231 : vector<2x32xf32>
    %233 = vector.extract_strided_slice %215 {offsets = [0, 64], sizes = [2, 32], strides = [1, 1]} : vector<2x96xf32> to vector<2x32xf32>
    %234 = vector.extract_strided_slice %216 {offsets = [0, 64], sizes = [2, 32], strides = [1, 1]} : vector<2x96xf32> to vector<2x32xf32>
    %235 = vector.broadcast %10 : vector<1x32xf32> to vector<2x32xf32>
    %236 = arith.addf %234, %235 : vector<2x32xf32>
    %237 = arith.mulf %224, %236 : vector<2x32xf32>
    %238 = arith.addf %233, %237 : vector<2x32xf32>
    %239 = math.tanh %238 : vector<2x32xf32>
    %240 = arith.subf %213, %239 : vector<2x32xf32>
    %241 = arith.mulf %232, %240 : vector<2x32xf32>
    %242 = arith.addf %239, %241 : vector<2x32xf32>
    %c14 = arith.constant 14 : index
    %c0_44 = arith.constant 0 : index
    %243 = vector.load %arg7[%c14, %c0_44] : memref<16x32xf32, #tpu.memory_space<vmem>>, vector<2x32xf32>
    tpu.vector_store %arg7[%c14, %c0_44], %242 {strides = array<i32>} : memref<16x32xf32, #tpu.memory_space<vmem>>, vector<2x32xf32>,
    %c0_45 = arith.constant 0 : index
    %c0_46 = arith.constant 0 : index
    %244 = vector.load %arg8[%c0_45, %c0_46] : memref<2x32xf32, #tpu.memory_space<vmem>>, vector<2x32xf32>
    tpu.vector_store %arg8[%c0_45, %c0_46], %242 {strides = array<i32>} : memref<2x32xf32, #tpu.memory_space<vmem>>, vector<2x32xf32>,
    return
  }
  func.func @transform_0(%arg0: i32) -> (i32, i32) {
    %c0_i32 = arith.constant 0 : i32
    %c0_i32_0 = arith.constant 0 : i32
    return %arg0, %c0_i32 : i32, i32
  }
  func.func @transform_1(%arg0: i32) -> (i32, i32) {
    %c0_i32 = arith.constant 0 : i32
    %c0_i32_0 = arith.constant 0 : i32
    %c0_i32_1 = arith.constant 0 : i32
    return %c0_i32, %c0_i32_0 : i32, i32
  }
  func.func @transform_2(%arg0: i32) -> (i32, i32) {
    %c0_i32 = arith.constant 0 : i32
    %c0_i32_0 = arith.constant 0 : i32
    %c0_i32_1 = arith.constant 0 : i32
    return %c0_i32, %c0_i32_0 : i32, i32
  }
  func.func @transform_3(%arg0: i32) -> (i32, i32) {
    %c0_i32 = arith.constant 0 : i32
    %c0_i32_0 = arith.constant 0 : i32
    %c0_i32_1 = arith.constant 0 : i32
    return %c0_i32, %c0_i32_0 : i32, i32
  }
  func.func @transform_4(%arg0: i32) -> (i32, i32) {
    %c0_i32 = arith.constant 0 : i32
    %c0_i32_0 = arith.constant 0 : i32
    %c0_i32_1 = arith.constant 0 : i32
    return %c0_i32, %c0_i32_0 : i32, i32
  }
  func.func @transform_5(%arg0: i32) -> (i32, i32) {
    %c0_i32 = arith.constant 0 : i32
    %c0_i32_0 = arith.constant 0 : i32
    %c0_i32_1 = arith.constant 0 : i32
    return %c0_i32, %c0_i32_0 : i32, i32
  }
  func.func @transform_6(%arg0: i32) -> (i32, i32) {
    %c0_i32 = arith.constant 0 : i32
    %c0_i32_0 = arith.constant 0 : i32
    return %arg0, %c0_i32 : i32, i32
  }
  func.func @transform_7(%arg0: i32) -> (i32, i32) {
    %c0_i32 = arith.constant 0 : i32
    %c0_i32_0 = arith.constant 0 : i32
    %c0_i32_1 = arith.constant 0 : i32
    return %c0_i32, %c0_i32_0 : i32, i32
  }
}

</mosaic_0001>

<llo_original>
// kernel: tpu_custom_call.1
$region0: #{tpu_custom_call.1}
  #allocation0 [shape = 'u32[]', space=smem, size = 0x4, offset = 0x4, fixed_abs, tag = 'smem constant byte address 0x4 - core index']
  #allocation1 [shape = 'u32[144,128]{1,0:T(1,128)}', space=vmem, size = 0x12000, scoped, tag = 'internal scratch']
  %s0 = inlined_call_operand.vmem [shape: f32[16,4], index: 0, kind: input, shape index: {}]
  %s1 = inlined_call_operand.vmem [shape: f32[2,32], index: 1, kind: input, shape index: {}]
  %s2 = inlined_call_operand.vmem [shape: f32[4,96], index: 2, kind: input, shape index: {}]
  %s3 = inlined_call_operand.hbm [shape: f32[32,96], index: 3, kind: input, shape index: {}]
  %s4 = inlined_call_operand.vmem [shape: f32[1,96], index: 4, kind: input, shape index: {}]
  %s5 = inlined_call_operand.vmem [shape: f32[1,32], index: 5, kind: input, shape index: {}]
  %s6 = inlined_call_operand.hbm [shape: f32[16,32], index: 6, kind: output, shape index: {0}]
  %s7 = inlined_call_operand.hbm [shape: f32[2,32], index: 7, kind: output, shape index: {1}]
  %8 = xla_tuple %s6, %s7
  %s9 = sld [smem:[#allocation0]]
  $region50: #{tpu_custom_call.1} parent=0
    _
  %s11 = ssub.s32 1, %s9
  %s12 = scalar_select 0, %s11, %s9
  $region1: #{tpu_custom_call.1} parent=0
    #allocation2 [shape = 'u8[16384]{0}', space=vmem, size = 0x4000, scoped, tag = 'input window, operand 3, single buffered']
    #allocation3 [shape = 's32[1]{0}', space=sflag, size = 0x4, scoped, tag = 'scoped memory for tpu_custom_call.1']
    #allocation4 [shape = 's32[1]{0}', space=sflag, size = 0x4, scoped, tag = 'scoped memory for tpu_custom_call.1']
    #allocation5 [shape = 'u8[8192]{0}', space=vmem, size = 0x2000, scoped, tag = 'output window, operand 0, single buffered']
    #allocation6 [shape = 'u8[1024]{0}', space=vmem, size = 0x400, scoped, tag = 'output window, operand 1, single buffered']
    #allocation7 [shape = 's32[1]{0}', space=sflag, size = 0x4, scoped, tag = 'scoped memory for tpu_custom_call.1']
    %13 = vsyncpa [#allocation3], 0
    %14 = vsyncpa [#allocation4], 0
    %15 = vsyncpa [#allocation7], 0
    // Predicated region
    $region2: #{tpu_custom_call.1} parent=1 // pred_check
      _
    $region3: #{tpu_custom_call.1} parent=1 // pred_check_branch
      %17 = sbr.rel (0) target = $region5
    $region4: #{tpu_custom_call.1} parent=1 // pred_region
      _
    $region5: #{tpu_custom_call.1} parent=1 // pred_fallthru
      _
    // Predicated region
    $region6: #{tpu_custom_call.1} parent=1 // pred_check
      _
    $region7: #{tpu_custom_call.1} parent=1 // pred_check_branch
      %19 = sbr.rel (0) target = $region9
    $region8: #{tpu_custom_call.1} parent=1 // pred_region
      _
    $region9: #{tpu_custom_call.1} parent=1 // pred_fallthru
      _
    // Predicated region
    $region10: #{tpu_custom_call.1} parent=1 // pred_check
      _
    $region11: #{tpu_custom_call.1} parent=1 // pred_check_branch
      %21 = sbr.rel (0) target = $region13
    $region12: #{tpu_custom_call.1} parent=1 // pred_region
      _
    $region13: #{tpu_custom_call.1} parent=1 // pred_fallthru
      _
    // Predicated region
    $region14: #{tpu_custom_call.1} parent=1 // pred_check
      _
    $region15: #{tpu_custom_call.1} parent=1 // pred_check_branch
      %23 = sbr.rel (0) target = $region17
    $region16: #{tpu_custom_call.1} parent=1 // pred_region
      %s25 = ssub.s32 512, 512
      %26 = vsyncadd [#allocation3], %s25
      %s27 = sshll.u32 [#allocation2], 4
      %s28 = int_to_ptr.vmem [resolvable:$true] %s27
      %33 = dma.hbm_to_vmem [thread:$0]  %s3, 512, %s28, [#allocation3], 128, 128, 8
    $region17: #{tpu_custom_call.1} parent=1 // pred_fallthru
      _
    // Predicated region
    $region18: #{tpu_custom_call.1} parent=1 // pred_check
      _
    $region19: #{tpu_custom_call.1} parent=1 // pred_check_branch
      %35 = sbr.rel (0) target = $region21
    $region20: #{tpu_custom_call.1} parent=1 // pred_region
      _
    $region21: #{tpu_custom_call.1} parent=1 // pred_fallthru
      _
    // Predicated region
    $region22: #{tpu_custom_call.1} parent=1 // pred_check
      _
    $region23: #{tpu_custom_call.1} parent=1 // pred_check_branch
      %37 = sbr.rel (0) target = $region25
    $region24: #{tpu_custom_call.1} parent=1 // pred_region
      _
    $region25: #{tpu_custom_call.1} parent=1 // pred_fallthru
      _
    // Predicated region
    $region26: #{tpu_custom_call.1} parent=1 // pred_check
      _
    $region27: #{tpu_custom_call.1} parent=1 // pred_check_branch
      %39 = sbr.rel (0) target = $region29
    $region28: #{tpu_custom_call.1} parent=1 // pred_region
      %40 = dma.done [#allocation3], 512
    $region29: #{tpu_custom_call.1} parent=1 // pred_fallthru
      _
    %p41 = scmp.eq.s32.totalorder 0, 0
    // Predicated region
    $region30: #{tpu_custom_call.1} parent=1 // pred_check
      %p42 = pneg %p41
    $region31: #{tpu_custom_call.1} parent=1 // pred_check_branch
      %44 = sbr.rel (%p42) target = $region33
    $region32: #{tpu_custom_call.1} parent=1 // pred_region
      %v45 = vld [vmem:[%s1] sm:$0x3]
      %vm46 = vcmask 254976
      %47 = vst.msk [vmem:[#allocation6] sm:$0x3] %vm46, %v45
    $region33: #{tpu_custom_call.1} parent=1 // pred_fallthru
      _
    %v48 = vld [vmem:[%s0] sm:$0xff]
    %v49 = vld [vmem:[%s0 + $0x8] sm:$0xff]
    %v50 = vld [vmem:[%s2] sm:$0xf]
    %v51 = vld [vmem:[%s4] sm:$0x1]
    %v53 = vlaneseq
    %v54 = vshrl.u32 %v53, 7
    %v55 = vsub.s32 0, %v54
    %v56 = vrot.slane %v51, %v55
    %vm58 = vcmask 31744
    %v60 = vsel %vm58, %v48, 0
    %v63 = vsel %vm58, %v49, 0
    %vm65 = vcmask 1043456
    %v67 = vsel %vm65, %v50, 0
    %69 = vmatprep.subr.mxu0 0.0
    %70 = vmatpush1.msra.mxu0 %v67
    %71 = vmatprep.subr.mxu0 0.0
    %72 = vmatpush1.msra.mxu0 0.0
    %73 = vmatprep.subr.mxu0 0.0
    %74 = vmatpush1.msra.mxu0 0.0
    %75 = vmatprep.subr.mxu0 0.0
    %76 = vmatpush1.msra.mxu0 0.0
    %77 = vmatprep.subr.mxu0 0.0
    %78 = vmatpush1.msra.mxu0 0.0
    %79 = vmatprep.subr.mxu0 0.0
    %80 = vmatpush1.msra.mxu0 0.0
    %81 = vmatprep.subr.mxu0 0.0
    %82 = vmatpush1.msra.mxu0 0.0
    %83 = vmatprep.subr.mxu0 0.0
    %84 = vmatpush1.msra.mxu0 0.0
    %85 = vmatprep.subr.mxu0 0.0
    %86 = vmatpush1.msra.mxu0 0.0
    %87 = vmatprep.subr.mxu0 0.0
    %88 = vmatpush1.msra.mxu0 0.0
    %89 = vmatprep.subr.mxu0 0.0
    %90 = vmatpush1.msra.mxu0 0.0
    %91 = vmatprep.subr.mxu0 0.0
    %92 = vmatpush1.msra.mxu0 0.0
    %93 = vmatprep.subr.mxu0 0.0
    %94 = vmatpush1.msra.mxu0 0.0
    %95 = vmatprep.subr.mxu0 0.0
    %96 = vmatpush1.msra.mxu0 0.0
    %97 = vmatprep.subr.mxu0 0.0
    %98 = vmatpush1.msra.mxu0 0.0
    %99 = vmatprep.subr.mxu0 0.0
    %100 = vmatpush1.msra.mxu0 0.0
    %101 = vmatprep.subr.mxu0 0.0
    %102 = vmatpush1.msra.mxu0 0.0
    %103 = vmatprep.subr.mxu0 0.0
    %104 = vmatpush1.msra.mxu0 0.0
    %105 = vmatprep.subr.mxu0 0.0
    %106 = vmatpush1.msra.mxu0 0.0
    %107 = vmatprep.subr.mxu0 0.0
    %108 = vmatpush1.msra.mxu0 0.0
    %109 = vmatprep.subr.mxu0 0.0
    %110 = vmatpush1.msra.mxu0 0.0
    %111 = vmatprep.subr.mxu0 0.0
    %112 = vmatpush1.msra.mxu0 0.0
    %113 = vmatprep.subr.mxu0 0.0
    %114 = vmatpush1.msra.mxu0 0.0
    %115 = vmatprep.subr.mxu0 0.0
    %116 = vmatpush1.msra.mxu0 0.0
    %117 = vmatprep.subr.mxu0 0.0
    %118 = vmatpush1.msra.mxu0 0.0
    %119 = vmatprep.subr.mxu0 0.0
    %120 = vmatpush1.msra.mxu0 0.0
    %121 = vmatprep.subr.mxu0 0.0
    %122 = vmatpush1.msra.mxu0 0.0
    %123 = vmatprep.subr.mxu0 0.0
    %124 = vmatpush1.msra.mxu0 0.0
    %125 = vmatprep.subr.mxu0 0.0
    %126 = vmatpush1.msra.mxu0 0.0
    %127 = vmatprep.subr.mxu0 0.0
    %128 = vmatpush1.msra.mxu0 0.0
    %129 = vmatprep.subr.mxu0 0.0
    %130 = vmatpush1.msra.mxu0 0.0
    %131 = vmatprep.subr.mxu0 0.0
    %132 = vmatpush1.msra.mxu0 0.0
    %133 = vmatprep.mubr.f32.mxu0 0.0
    %134 = vmatmul.mubr.f32.gmra.mrb[0].mxu0 %v60
    %v135 = vpop.f32.mrb[0].mxu0
    %v136 = vadd.f32 %v56, %v135
    %v137 = vpop.f32.mrb[0].mxu0
    %138 = vmatprep.mubr.f32.mxu0 0.0
    %139 = vmatmul.mubr.f32.gmra.mrb[0].mxu0 %v63
    %v140 = vpop.f32.mrb[0].mxu0
    %v141 = vadd.f32 %v56, %v140
    %v142 = vpop.f32.mrb[0].mxu0
    %143 = vdwg.mxu0
    %v144 = vld [vmem:[#allocation2] sm:$0xff]
    %v145 = vld [vmem:[#allocation2 + $0x8] sm:$0xff]
    %v146 = vld [vmem:[#allocation2 + $0x10] sm:$0xff]
    %v147 = vld [vmem:[#allocation2 + $0x18] sm:$0xff]
    %v148 = vld [vmem:[%s5] sm:$0x1]
    %v149 = vld [vmem:[#allocation6] sm:$0x3]
    %vm150 = vcmask 261120
    %v152 = vsel %vm150, %v149, 0
    %154 = vmatprep.subr.mxu0 0.0
    %155 = vmatpush1.msra.mxu0 %v144
    %156 = vmatprep.subr.mxu0 0.0
    %157 = vmatpush1.msra.mxu0 %v145
    %158 = vmatprep.subr.mxu0 0.0
    %159 = vmatpush1.msra.mxu0 %v146
    %160 = vmatprep.subr.mxu0 0.0
    %161 = vmatpush1.msra.mxu0 %v147
    %162 = vmatprep.subr.mxu0 0.0
    %163 = vmatpush1.msra.mxu0 0.0
    %164 = vmatprep.subr.mxu0 0.0
    %165 = vmatpush1.msra.mxu0 0.0
    %166 = vmatprep.subr.mxu0 0.0
    %167 = vmatpush1.msra.mxu0 0.0
    %168 = vmatprep.subr.mxu0 0.0
    %169 = vmatpush1.msra.mxu0 0.0
    %170 = vmatprep.subr.mxu0 0.0
    %171 = vmatpush1.msra.mxu0 0.0
    %172 = vmatprep.subr.mxu0 0.0
    %173 = vmatpush1.msra.mxu0 0.0
    %174 = vmatprep.subr.mxu0 0.0
    %175 = vmatpush1.msra.mxu0 0.0
    %176 = vmatprep.subr.mxu0 0.0
    %177 = vmatpush1.msra.mxu0 0.0
    %178 = vmatprep.subr.mxu0 0.0
    %179 = vmatpush1.msra.mxu0 0.0
    %180 = vmatprep.subr.mxu0 0.0
    %181 = vmatpush1.msra.mxu0 0.0
    %182 = vmatprep.subr.mxu0 0.0
    %183 = vmatpush1.msra.mxu0 0.0
    %184 = vmatprep.subr.mxu0 0.0
    %185 = vmatpush1.msra.mxu0 0.0
    %186 = vmatprep.subr.mxu0 0.0
    %187 = vmatpush1.msra.mxu0 0.0
    %188 = vmatprep.subr.mxu0 0.0
    %189 = vmatpush1.msra.mxu0 0.0
    %190 = vmatprep.subr.mxu0 0.0
    %191 = vmatpush1.msra.mxu0 0.0
    %192 = vmatprep.subr.mxu0 0.0
    %193 = vmatpush1.msra.mxu0 0.0
    %194 = vmatprep.subr.mxu0 0.0
    %195 = vmatpush1.msra.mxu0 0.0
    %196 = vmatprep.subr.mxu0 0.0
    %197 = vmatpush1.msra.mxu0 0.0
    %198 = vmatprep.subr.mxu0 0.0
    %199 = vmatpush1.msra.mxu0 0.0
    %200 = vmatprep.subr.mxu0 0.0
    %201 = vmatpush1.msra.mxu0 0.0
    %202 = vmatprep.subr.mxu0 0.0
    %203 = vmatpush1.msra.mxu0 0.0
    %204 = vmatprep.subr.mxu0 0.0
    %205 = vmatpush1.msra.mxu0 0.0
    %206 = vmatprep.subr.mxu0 0.0
    %207 = vmatpush1.msra.mxu0 0.0
    %208 = vmatprep.subr.mxu0 0.0
    %209 = vmatpush1.msra.mxu0 0.0
    %210 = vmatprep.subr.mxu0 0.0
    %211 = vmatpush1.msra.mxu0 0.0
    %212 = vmatprep.subr.mxu0 0.0
    %213 = vmatpush1.msra.mxu0 0.0
    %214 = vmatprep.subr.mxu0 0.0
    %215 = vmatpush1.msra.mxu0 0.0
    %216 = vmatprep.subr.mxu0 0.0
    %217 = vmatpush1.msra.mxu0 0.0
    %218 = vmatprep.mubr.f32.mxu0 0.0
    %219 = vmatmul.mubr.f32.gmra.mrb[0].mxu0 %v152
    %v220 = vpop.f32.mrb[0].mxu0
    %v221 = vadd.f32 0.0, %v220
    %v222 = vpop.f32.mrb[0].mxu0
    %223 = vdwg.mxu0
    %v224 = vadd.f32 %v136, %v221
    %v225 = vxor.u32 %v224, 2147483648
    %v226 = vmul.f32 %v225, 1.442695
    %v227 = vpow.pop %v226
    %v228 = vadd.f32 %v227, 1.0
    %v229 = vrcp.pop %v228
    %v230 = vmul.f32 1.0, %v229
    %v232 = vlaneseq
    %v233 = vshrl.u32 %v232, 7
    %v234 = vsub.s32 0, %v233
    %v235 = vrot.slane %v148, %v234
    %236 = vrot.lane.b32.xlu0 %v235, 64
    %v237 = vpop.permute.xlu0 %236
    %v239 = vadd.f32 %v221, %v237
    %241 = vrot.lane.b32.xlu0 %v239, 64
    %v242 = vpop.permute.xlu0 %241
    %v244 = vmul.f32 %v230, %v242
    %246 = vrot.lane.b32.xlu0 %v244, 64
    %v247 = vpop.permute.xlu0 %246
    %v249 = vadd.f32 %v136, %v247
    %v250 = vtanh.pop %v249
    %252 = vrot.lane.b32.xlu0 %v250, 64
    %v253 = vpop.permute.xlu0 %252
    %v255 = vsub.f32 %v149, %v253
    %257 = vrot.lane.b32.xlu0 %v255, 32
    %v258 = vpop.permute.xlu0 %257
    %v260 = vmul.f32 %v230, %v258
    %262 = vrot.lane.b32.xlu0 %v260, 32
    %v263 = vpop.permute.xlu0 %262
    %v265 = vadd.f32 %v250, %v263
    %267 = vrot.lane.b32.xlu0 %v265, 64
    %v268 = vpop.permute.xlu0 %267
    %vm270 = vcmask 254976
    %271 = vst.msk [vmem:[#allocation5] sm:$0x3] %vm270, %v268
    %v272 = vsel %vm150, %v268, 0
    %274 = vmatprep.subr.mxu0 0.0
    %275 = vmatpush1.msra.mxu0 %v144
    %276 = vmatprep.subr.mxu0 0.0
    %277 = vmatpush1.msra.mxu0 %v145
    %278 = vmatprep.subr.mxu0 0.0
    %279 = vmatpush1.msra.mxu0 %v146
    %280 = vmatprep.subr.mxu0 0.0
    %281 = vmatpush1.msra.mxu0 %v147
    %282 = vmatprep.subr.mxu0 0.0
    %283 = vmatpush1.msra.mxu0 0.0
    %284 = vmatprep.subr.mxu0 0.0
    %285 = vmatpush1.msra.mxu0 0.0
    %286 = vmatprep.subr.mxu0 0.0
    %287 = vmatpush1.msra.mxu0 0.0
    %288 = vmatprep.subr.mxu0 0.0
    %289 = vmatpush1.msra.mxu0 0.0
    %290 = vmatprep.subr.mxu0 0.0
    %291 = vmatpush1.msra.mxu0 0.0
    %292 = vmatprep.subr.mxu0 0.0
    %293 = vmatpush1.msra.mxu0 0.0
    %294 = vmatprep.subr.mxu0 0.0
    %295 = vmatpush1.msra.mxu0 0.0
    %296 = vmatprep.subr.mxu0 0.0
    %297 = vmatpush1.msra.mxu0 0.0
    %298 = vmatprep.subr.mxu0 0.0
    %299 = vmatpush1.msra.mxu0 0.0
    %300 = vmatprep.subr.mxu0 0.0
    %301 = vmatpush1.msra.mxu0 0.0
    %302 = vmatprep.subr.mxu0 0.0
    %303 = vmatpush1.msra.mxu0 0.0
    %304 = vmatprep.subr.mxu0 0.0
    %305 = vmatpush1.msra.mxu0 0.0
    %306 = vmatprep.subr.mxu0 0.0
    %307 = vmatpush1.msra.mxu0 0.0
    %308 = vmatprep.subr.mxu0 0.0
    %309 = vmatpush1.msra.mxu0 0.0
    %310 = vmatprep.subr.mxu0 0.0
    %311 = vmatpush1.msra.mxu0 0.0
    %312 = vmatprep.subr.mxu0 0.0
    %313 = vmatpush1.msra.mxu0 0.0
    %314 = vmatprep.subr.mxu0 0.0
    %315 = vmatpush1.msra.mxu0 0.0
    %316 = vmatprep.subr.mxu0 0.0
    %317 = vmatpush1.msra.mxu0 0.0
    %318 = vmatprep.subr.mxu0 0.0
    %319 = vmatpush1.msra.mxu0 0.0
    %320 = vmatprep.subr.mxu0 0.0
    %321 = vmatpush1.msra.mxu0 0.0
    %322 = vmatprep.subr.mxu0 0.0
    %323 = vmatpush1.msra.mxu0 0.0
    %324 = vmatprep.subr.mxu0 0.0
    %325 = vmatpush1.msra.mxu0 0.0
    %326 = vmatprep.subr.mxu0 0.0
    %327 = vmatpush1.msra.mxu0 0.0
    %328 = vmatprep.subr.mxu0 0.0
    %329 = vmatpush1.msra.mxu0 0.0
    %330 = vmatprep.subr.mxu0 0.0
    %331 = vmatpush1.msra.mxu0 0.0
    %332 = vmatprep.subr.mxu0 0.0
    %333 = vmatpush1.msra.mxu0 0.0
    %334 = vmatprep.subr.mxu0 0.0
    %335 = vmatpush1.msra.mxu0 0.0
    %336 = vmatprep.subr.mxu0 0.0
    %337 = vmatpush1.msra.mxu0 0.0
    %338 = vmatprep.mubr.f32.mxu0 0.0
    %339 = vmatmul.mubr.f32.gmra.mrb[0].mxu0 %v272
    %v340 = vpop.f32.mrb[0].mxu0
    %v341 = vadd.f32 0.0, %v340
    %v342 = vpop.f32.mrb[0].mxu0
    %343 = vdwg.mxu0
    %v345 = vrot.slane %v341, 6
    %v347 = vadd.f32 %v136, %v345
    %v348 = vxor.u32 %v347, 2147483648
    %v349 = vmul.f32 %v348, 1.442695
    %v350 = vpow.pop %v349
    %v351 = vadd.f32 %v350, 1.0
    %v352 = vrcp.pop %v351
    %v353 = vmul.f32 1.0, %v352
    %v354 = vadd.f32 %v341, %v237
    %v356 = vrot.slane %v354, 6
    %357 = vrot.lane.b32.xlu0 %v356, 64
    %v358 = vpop.permute.xlu0 %357
    %v360 = vmul.f32 %v353, %v358
    %362 = vrot.lane.b32.xlu0 %v360, 64
    %v363 = vpop.permute.xlu0 %362
    %v365 = vadd.f32 %v136, %v363
    %v366 = vtanh.pop %v365
    %v368 = vrot.slane %v366, 2
    %v370 = vsub.f32 %v265, %v368
    %v372 = vrot.slane %v370, 6
    %373 = vrot.lane.b32.xlu0 %v372, 96
    %v374 = vpop.permute.xlu0 %373
    %v376 = vmul.f32 %v353, %v374
    %378 = vrot.lane.b32.xlu0 %v376, 32
    %v379 = vpop.permute.xlu0 %378
    %v381 = vadd.f32 %v366, %v379
    %383 = vrot.lane.b32.xlu0 %v381, 64
    %v384 = vpop.permute.xlu0 %383
    %vm386 = vcmask 257026
    %387 = vst.msk [vmem:[#allocation5] sm:$0xc] %vm386, %v384
    %v388 = vrot.slane %v381, 2
    %389 = vrot.lane.b32.xlu0 %v388, 64
    %v390 = vpop.permute.xlu0 %389
    %v391 = vsel %vm150, %v390, 0
    %393 = vmatprep.subr.mxu0 0.0
    %394 = vmatpush1.msra.mxu0 %v144
    %395 = vmatprep.subr.mxu0 0.0
    %396 = vmatpush1.msra.mxu0 %v145
    %397 = vmatprep.subr.mxu0 0.0
    %398 = vmatpush1.msra.mxu0 %v146
    %399 = vmatprep.subr.mxu0 0.0
    %400 = vmatpush1.msra.mxu0 %v147
    %401 = vmatprep.subr.mxu0 0.0
    %402 = vmatpush1.msra.mxu0 0.0
    %403 = vmatprep.subr.mxu0 0.0
    %404 = vmatpush1.msra.mxu0 0.0
    %405 = vmatprep.subr.mxu0 0.0
    %406 = vmatpush1.msra.mxu0 0.0
    %407 = vmatprep.subr.mxu0 0.0
    %408 = vmatpush1.msra.mxu0 0.0
    %409 = vmatprep.subr.mxu0 0.0
    %410 = vmatpush1.msra.mxu0 0.0
    %411 = vmatprep.subr.mxu0 0.0
    %412 = vmatpush1.msra.mxu0 0.0
    %413 = vmatprep.subr.mxu0 0.0
    %414 = vmatpush1.msra.mxu0 0.0
    %415 = vmatprep.subr.mxu0 0.0
    %416 = vmatpush1.msra.mxu0 0.0
    %417 = vmatprep.subr.mxu0 0.0
    %418 = vmatpush1.msra.mxu0 0.0
    %419 = vmatprep.subr.mxu0 0.0
    %420 = vmatpush1.msra.mxu0 0.0
    %421 = vmatprep.subr.mxu0 0.0
    %422 = vmatpush1.msra.mxu0 0.0
    %423 = vmatprep.subr.mxu0 0.0
    %424 = vmatpush1.msra.mxu0 0.0
    %425 = vmatprep.subr.mxu0 0.0
    %426 = vmatpush1.msra.mxu0 0.0
    %427 = vmatprep.subr.mxu0 0.0
    %428 = vmatpush1.msra.mxu0 0.0
    %429 = vmatprep.subr.mxu0 0.0
    %430 = vmatpush1.msra.mxu0 0.0
    %431 = vmatprep.subr.mxu0 0.0
    %432 = vmatpush1.msra.mxu0 0.0
    %433 = vmatprep.subr.mxu0 0.0
    %434 = vmatpush1.msra.mxu0 0.0
    %435 = vmatprep.subr.mxu0 0.0
    %436 = vmatpush1.msra.mxu0 0.0
    %437 = vmatprep.subr.mxu0 0.0
    %438 = vmatpush1.msra.mxu0 0.0
    %439 = vmatprep.subr.mxu0 0.0
    %440 = vmatpush1.msra.mxu0 0.0
    %441 = vmatprep.subr.mxu0 0.0
    %442 = vmatpush1.msra.mxu0 0.0
    %443 = vmatprep.subr.mxu0 0.0
    %444 = vmatpush1.msra.mxu0 0.0
    %445 = vmatprep.subr.mxu0 0.0
    %446 = vmatpush1.msra.mxu0 0.0
    %447 = vmatprep.subr.mxu0 0.0
    %448 = vmatpush1.msra.mxu0 0.0
    %449 = vmatprep.subr.mxu0 0.0
    %450 = vmatpush1.msra.mxu0 0.0
    %451 = vmatprep.subr.mxu0 0.0
    %452 = vmatpush1.msra.mxu0 0.0
    %453 = vmatprep.subr.mxu0 0.0
    %454 = vmatpush1.msra.mxu0 0.0
    %455 = vmatprep.subr.mxu0 0.0
    %456 = vmatpush1.msra.mxu0 0.0
    %457 = vmatprep.mubr.f32.mxu0 0.0
    %458 = vmatmul.mubr.f32.gmra.mrb[0].mxu0 %v391
    %v459 = vpop.f32.mrb[0].mxu0
    %v460 = vadd.f32 0.0, %v459
    %v461 = vpop.f32.mrb[0].mxu0
    %462 = vdwg.mxu0
    %v464 = vrot.slane %v460, 4
    %v466 = vadd.f32 %v136, %v464
    %v467 = vxor.u32 %v466, 2147483648
    %v468 = vmul.f32 %v467, 1.442695
    %v469 = vpow.pop %v468
    %v470 = vadd.f32 %v469, 1.0
    %v471 = vrcp.pop %v470
    %v472 = vmul.f32 1.0, %v471
    %v473 = vadd.f32 %v460, %v237
    %v475 = vrot.slane %v473, 4
    %476 = vrot.lane.b32.xlu0 %v475, 64
    %v477 = vpop.permute.xlu0 %476
    %v479 = vmul.f32 %v472, %v477
    %481 = vrot.lane.b32.xlu0 %v479, 64
    %v482 = vpop.permute.xlu0 %481
    %v484 = vadd.f32 %v136, %v482
    %v485 = vtanh.pop %v484
    %v487 = vrot.slane %v485, 2
    %v489 = vsub.f32 %v381, %v487
    %v491 = vrot.slane %v489, 6
    %492 = vrot.lane.b32.xlu0 %v491, 96
    %v493 = vpop.permute.xlu0 %492
    %v495 = vmul.f32 %v472, %v493
    %497 = vrot.lane.b32.xlu0 %v495, 32
    %v498 = vpop.permute.xlu0 %497
    %v500 = vadd.f32 %v485, %v498
    %502 = vrot.lane.b32.xlu0 %v500, 64
    %v503 = vpop.permute.xlu0 %502
    %vm505 = vcmask 259076
    %506 = vst.msk [vmem:[#allocation5] sm:$0x30] %vm505, %v503
    %v507 = vrot.slane %v500, 4
    %508 = vrot.lane.b32.xlu0 %v507, 64
    %v509 = vpop.permute.xlu0 %508
    %v510 = vsel %vm150, %v509, 0
    %512 = vmatprep.subr.mxu0 0.0
    %513 = vmatpush1.msra.mxu0 %v144
    %514 = vmatprep.subr.mxu0 0.0
    %515 = vmatpush1.msra.mxu0 %v145
    %516 = vmatprep.subr.mxu0 0.0
    %517 = vmatpush1.msra.mxu0 %v146
    %518 = vmatprep.subr.mxu0 0.0
    %519 = vmatpush1.msra.mxu0 %v147
    %520 = vmatprep.subr.mxu0 0.0
    %521 = vmatpush1.msra.mxu0 0.0
    %522 = vmatprep.subr.mxu0 0.0
    %523 = vmatpush1.msra.mxu0 0.0
    %524 = vmatprep.subr.mxu0 0.0
    %525 = vmatpush1.msra.mxu0 0.0
    %526 = vmatprep.subr.mxu0 0.0
    %527 = vmatpush1.msra.mxu0 0.0
    %528 = vmatprep.subr.mxu0 0.0
    %529 = vmatpush1.msra.mxu0 0.0
    %530 = vmatprep.subr.mxu0 0.0
    %531 = vmatpush1.msra.mxu0 0.0
    %532 = vmatprep.subr.mxu0 0.0
    %533 = vmatpush1.msra.mxu0 0.0
    %534 = vmatprep.subr.mxu0 0.0
    %535 = vmatpush1.msra.mxu0 0.0
    %536 = vmatprep.subr.mxu0 0.0
    %537 = vmatpush1.msra.mxu0 0.0
    %538 = vmatprep.subr.mxu0 0.0
    %539 = vmatpush1.msra.mxu0 0.0
    %540 = vmatprep.subr.mxu0 0.0
    %541 = vmatpush1.msra.mxu0 0.0
    %542 = vmatprep.subr.mxu0 0.0
    %543 = vmatpush1.msra.mxu0 0.0
    %544 = vmatprep.subr.mxu0 0.0
    %545 = vmatpush1.msra.mxu0 0.0
    %546 = vmatprep.subr.mxu0 0.0
    %547 = vmatpush1.msra.mxu0 0.0
    %548 = vmatprep.subr.mxu0 0.0
    %549 = vmatpush1.msra.mxu0 0.0
    %550 = vmatprep.subr.mxu0 0.0
    %551 = vmatpush1.msra.mxu0 0.0
    %552 = vmatprep.subr.mxu0 0.0
    %553 = vmatpush1.msra.mxu0 0.0
    %554 = vmatprep.subr.mxu0 0.0
    %555 = vmatpush1.msra.mxu0 0.0
    %556 = vmatprep.subr.mxu0 0.0
    %557 = vmatpush1.msra.mxu0 0.0
    %558 = vmatprep.subr.mxu0 0.0
    %559 = vmatpush1.msra.mxu0 0.0
    %560 = vmatprep.subr.mxu0 0.0
    %561 = vmatpush1.msra.mxu0 0.0
    %562 = vmatprep.subr.mxu0 0.0
    %563 = vmatpush1.msra.mxu0 0.0
    %564 = vmatprep.subr.mxu0 0.0
    %565 = vmatpush1.msra.mxu0 0.0
    %566 = vmatprep.subr.mxu0 0.0
    %567 = vmatpush1.msra.mxu0 0.0
    %568 = vmatprep.subr.mxu0 0.0
    %569 = vmatpush1.msra.mxu0 0.0
    %570 = vmatprep.subr.mxu0 0.0
    %571 = vmatpush1.msra.mxu0 0.0
    %572 = vmatprep.subr.mxu0 0.0
    %573 = vmatpush1.msra.mxu0 0.0
    %574 = vmatprep.subr.mxu0 0.0
    %575 = vmatpush1.msra.mxu0 0.0
    %576 = vmatprep.mubr.f32.mxu0 0.0
    %577 = vmatmul.mubr.f32.gmra.mrb[0].mxu0 %v510
    %v578 = vpop.f32.mrb[0].mxu0
    %v579 = vadd.f32 0.0, %v578
    %v580 = vpop.f32.mrb[0].mxu0
    %581 = vdwg.mxu0
    %v583 = vrot.slane %v579, 2
    %v585 = vadd.f32 %v136, %v583
    %v586 = vxor.u32 %v585, 2147483648
    %v587 = vmul.f32 %v586, 1.442695
    %v588 = vpow.pop %v587
    %v589 = vadd.f32 %v588, 1.0
    %v590 = vrcp.pop %v589
    %v591 = vmul.f32 1.0, %v590
    %v592 = vadd.f32 %v579, %v237
    %v594 = vrot.slane %v592, 2
    %595 = vrot.lane.b32.xlu0 %v594, 64
    %v596 = vpop.permute.xlu0 %595
    %v598 = vmul.f32 %v591, %v596
    %600 = vrot.lane.b32.xlu0 %v598, 64
    %v601 = vpop.permute.xlu0 %600
    %v603 = vadd.f32 %v136, %v601
    %v604 = vtanh.pop %v603
    %v606 = vrot.slane %v604, 2
    %v608 = vsub.f32 %v500, %v606
    %v610 = vrot.slane %v608, 6
    %611 = vrot.lane.b32.xlu0 %v610, 96
    %v612 = vpop.permute.xlu0 %611
    %v614 = vmul.f32 %v591, %v612
    %616 = vrot.lane.b32.xlu0 %v614, 32
    %v617 = vpop.permute.xlu0 %616
    %v619 = vadd.f32 %v604, %v617
    %621 = vrot.lane.b32.xlu0 %v619, 64
    %v622 = vpop.permute.xlu0 %621
    %vm624 = vcmask 261126
    %625 = vst.msk [vmem:[#allocation5] sm:$0xc0] %vm624, %v622
    %v626 = vrot.slane %v619, 6
    %627 = vrot.lane.b32.xlu0 %v626, 64
    %v628 = vpop.permute.xlu0 %627
    %v629 = vsel %vm150, %v628, 0
    %631 = vmatprep.subr.mxu0 0.0
    %632 = vmatpush1.msra.mxu0 %v144
    %633 = vmatprep.subr.mxu0 0.0
    %634 = vmatpush1.msra.mxu0 %v145
    %635 = vmatprep.subr.mxu0 0.0
    %636 = vmatpush1.msra.mxu0 %v146
    %637 = vmatprep.subr.mxu0 0.0
    %638 = vmatpush1.msra.mxu0 %v147
    %639 = vmatprep.subr.mxu0 0.0
    %640 = vmatpush1.msra.mxu0 0.0
    %641 = vmatprep.subr.mxu0 0.0
    %642 = vmatpush1.msra.mxu0 0.0
    %643 = vmatprep.subr.mxu0 0.0
    %644 = vmatpush1.msra.mxu0 0.0
    %645 = vmatprep.subr.mxu0 0.0
    %646 = vmatpush1.msra.mxu0 0.0
    %647 = vmatprep.subr.mxu0 0.0
    %648 = vmatpush1.msra.mxu0 0.0
    %649 = vmatprep.subr.mxu0 0.0
    %650 = vmatpush1.msra.mxu0 0.0
    %651 = vmatprep.subr.mxu0 0.0
    %652 = vmatpush1.msra.mxu0 0.0
    %653 = vmatprep.subr.mxu0 0.0
    %654 = vmatpush1.msra.mxu0 0.0
    %655 = vmatprep.subr.mxu0 0.0
    %656 = vmatpush1.msra.mxu0 0.0
    %657 = vmatprep.subr.mxu0 0.0
    %658 = vmatpush1.msra.mxu0 0.0
    %659 = vmatprep.subr.mxu0 0.0
    %660 = vmatpush1.msra.mxu0 0.0
    %661 = vmatprep.subr.mxu0 0.0
    %662 = vmatpush1.msra.mxu0 0.0
    %663 = vmatprep.subr.mxu0 0.0
    %664 = vmatpush1.msra.mxu0 0.0
    %665 = vmatprep.subr.mxu0 0.0
    %666 = vmatpush1.msra.mxu0 0.0
    %667 = vmatprep.subr.mxu0 0.0
    %668 = vmatpush1.msra.mxu0 0.0
    %669 = vmatprep.subr.mxu0 0.0
    %670 = vmatpush1.msra.mxu0 0.0
    %671 = vmatprep.subr.mxu0 0.0
    %672 = vmatpush1.msra.mxu0 0.0
    %673 = vmatprep.subr.mxu0 0.0
    %674 = vmatpush1.msra.mxu0 0.0
    %675 = vmatprep.subr.mxu0 0.0
    %676 = vmatpush1.msra.mxu0 0.0
    %677 = vmatprep.subr.mxu0 0.0
    %678 = vmatpush1.msra.mxu0 0.0
    %679 = vmatprep.subr.mxu0 0.0
    %680 = vmatpush1.msra.mxu0 0.0
    %681 = vmatprep.subr.mxu0 0.0
    %682 = vmatpush1.msra.mxu0 0.0
    %683 = vmatprep.subr.mxu0 0.0
    %684 = vmatpush1.msra.mxu0 0.0
    %685 = vmatprep.subr.mxu0 0.0
    %686 = vmatpush1.msra.mxu0 0.0
    %687 = vmatprep.subr.mxu0 0.0
    %688 = vmatpush1.msra.mxu0 0.0
    %689 = vmatprep.subr.mxu0 0.0
    %690 = vmatpush1.msra.mxu0 0.0
    %691 = vmatprep.subr.mxu0 0.0
    %692 = vmatpush1.msra.mxu0 0.0
    %693 = vmatprep.subr.mxu0 0.0
    %694 = vmatpush1.msra.mxu0 0.0
    %695 = vmatprep.mubr.f32.mxu0 0.0
    %696 = vmatmul.mubr.f32.gmra.mrb[0].mxu0 %v629
    %v697 = vpop.f32.mrb[0].mxu0
    %v698 = vadd.f32 0.0, %v697
    %v699 = vpop.f32.mrb[0].mxu0
    %700 = vdwg.mxu0
    %v701 = vadd.f32 %v141, %v698
    %v702 = vxor.u32 %v701, 2147483648
    %v703 = vmul.f32 %v702, 1.442695
    %v704 = vpow.pop %v703
    %v705 = vadd.f32 %v704, 1.0
    %v706 = vrcp.pop %v705
    %v707 = vmul.f32 1.0, %v706
    %v708 = vadd.f32 %v698, %v237
    %710 = vrot.lane.b32.xlu0 %v708, 64
    %v711 = vpop.permute.xlu0 %710
    %v713 = vmul.f32 %v707, %v711
    %715 = vrot.lane.b32.xlu0 %v713, 64
    %v716 = vpop.permute.xlu0 %715
    %v718 = vadd.f32 %v141, %v716
    %v719 = vtanh.pop %v718
    %v721 = vrot.slane %v719, 2
    %v723 = vsub.f32 %v619, %v721
    %v725 = vrot.slane %v723, 6
    %726 = vrot.lane.b32.xlu0 %v725, 96
    %v727 = vpop.permute.xlu0 %726
    %v729 = vmul.f32 %v707, %v727
    %731 = vrot.lane.b32.xlu0 %v729, 32
    %v732 = vpop.permute.xlu0 %731
    %v734 = vadd.f32 %v719, %v732
    %736 = vrot.lane.b32.xlu0 %v734, 64
    %v737 = vpop.permute.xlu0 %736
    %739 = vst.msk [vmem:[#allocation5 + $0x8] sm:$0x3] %vm270, %v737
    %v740 = vsel %vm150, %v737, 0
    %742 = vmatprep.subr.mxu0 0.0
    %743 = vmatpush1.msra.mxu0 %v144
    %744 = vmatprep.subr.mxu0 0.0
    %745 = vmatpush1.msra.mxu0 %v145
    %746 = vmatprep.subr.mxu0 0.0
    %747 = vmatpush1.msra.mxu0 %v146
    %748 = vmatprep.subr.mxu0 0.0
    %749 = vmatpush1.msra.mxu0 %v147
    %750 = vmatprep.subr.mxu0 0.0
    %751 = vmatpush1.msra.mxu0 0.0
    %752 = vmatprep.subr.mxu0 0.0
    %753 = vmatpush1.msra.mxu0 0.0
    %754 = vmatprep.subr.mxu0 0.0
    %755 = vmatpush1.msra.mxu0 0.0
    %756 = vmatprep.subr.mxu0 0.0
    %757 = vmatpush1.msra.mxu0 0.0
    %758 = vmatprep.subr.mxu0 0.0
    %759 = vmatpush1.msra.mxu0 0.0
    %760 = vmatprep.subr.mxu0 0.0
    %761 = vmatpush1.msra.mxu0 0.0
    %762 = vmatprep.subr.mxu0 0.0
    %763 = vmatpush1.msra.mxu0 0.0
    %764 = vmatprep.subr.mxu0 0.0
    %765 = vmatpush1.msra.mxu0 0.0
    %766 = vmatprep.subr.mxu0 0.0
    %767 = vmatpush1.msra.mxu0 0.0
    %768 = vmatprep.subr.mxu0 0.0
    %769 = vmatpush1.msra.mxu0 0.0
    %770 = vmatprep.subr.mxu0 0.0
    %771 = vmatpush1.msra.mxu0 0.0
    %772 = vmatprep.subr.mxu0 0.0
    %773 = vmatpush1.msra.mxu0 0.0
    %774 = vmatprep.subr.mxu0 0.0
    %775 = vmatpush1.msra.mxu0 0.0
    %776 = vmatprep.subr.mxu0 0.0
    %777 = vmatpush1.msra.mxu0 0.0
    %778 = vmatprep.subr.mxu0 0.0
    %779 = vmatpush1.msra.mxu0 0.0
    %780 = vmatprep.subr.mxu0 0.0
    %781 = vmatpush1.msra.mxu0 0.0
    %782 = vmatprep.subr.mxu0 0.0
    %783 = vmatpush1.msra.mxu0 0.0
    %784 = vmatprep.subr.mxu0 0.0
    %785 = vmatpush1.msra.mxu0 0.0
    %786 = vmatprep.subr.mxu0 0.0
    %787 = vmatpush1.msra.mxu0 0.0
    %788 = vmatprep.subr.mxu0 0.0
    %789 = vmatpush1.msra.mxu0 0.0
    %790 = vmatprep.subr.mxu0 0.0
    %791 = vmatpush1.msra.mxu0 0.0
    %792 = vmatprep.subr.mxu0 0.0
    %793 = vmatpush1.msra.mxu0 0.0
    %794 = vmatprep.subr.mxu0 0.0
    %795 = vmatpush1.msra.mxu0 0.0
    %796 = vmatprep.subr.mxu0 0.0
    %797 = vmatpush1.msra.mxu0 0.0
    %798 = vmatprep.subr.mxu0 0.0
    %799 = vmatpush1.msra.mxu0 0.0
    %800 = vmatprep.subr.mxu0 0.0
    %801 = vmatpush1.msra.mxu0 0.0
    %802 = vmatprep.subr.mxu0 0.0
    %803 = vmatpush1.msra.mxu0 0.0
    %804 = vmatprep.subr.mxu0 0.0
    %805 = vmatpush1.msra.mxu0 0.0
    %806 = vmatprep.mubr.f32.mxu0 0.0
    %807 = vmatmul.mubr.f32.gmra.mrb[0].mxu0 %v740
    %v808 = vpop.f32.mrb[0].mxu0
    %v809 = vadd.f32 0.0, %v808
    %v810 = vpop.f32.mrb[0].mxu0
    %811 = vdwg.mxu0
    %v813 = vrot.slane %v809, 6
    %v815 = vadd.f32 %v141, %v813
    %v816 = vxor.u32 %v815, 2147483648
    %v817 = vmul.f32 %v816, 1.442695
    %v818 = vpow.pop %v817
    %v819 = vadd.f32 %v818, 1.0
    %v820 = vrcp.pop %v819
    %v821 = vmul.f32 1.0, %v820
    %v822 = vadd.f32 %v809, %v237
    %v824 = vrot.slane %v822, 6
    %825 = vrot.lane.b32.xlu0 %v824, 64
    %v826 = vpop.permute.xlu0 %825
    %v828 = vmul.f32 %v821, %v826
    %830 = vrot.lane.b32.xlu0 %v828, 64
    %v831 = vpop.permute.xlu0 %830
    %v833 = vadd.f32 %v141, %v831
    %v834 = vtanh.pop %v833
    %v836 = vrot.slane %v834, 2
    %v838 = vsub.f32 %v734, %v836
    %v840 = vrot.slane %v838, 6
    %841 = vrot.lane.b32.xlu0 %v840, 96
    %v842 = vpop.permute.xlu0 %841
    %v844 = vmul.f32 %v821, %v842
    %846 = vrot.lane.b32.xlu0 %v844, 32
    %v847 = vpop.permute.xlu0 %846
    %v849 = vadd.f32 %v834, %v847
    %851 = vrot.lane.b32.xlu0 %v849, 64
    %v852 = vpop.permute.xlu0 %851
    %854 = vst.msk [vmem:[#allocation5 + $0x8] sm:$0xc] %vm386, %v852
    %v855 = vrot.slane %v849, 2
    %856 = vrot.lane.b32.xlu0 %v855, 64
    %v857 = vpop.permute.xlu0 %856
    %v858 = vsel %vm150, %v857, 0
    %860 = vmatprep.subr.mxu0 0.0
    %861 = vmatpush1.msra.mxu0 %v144
    %862 = vmatprep.subr.mxu0 0.0
    %863 = vmatpush1.msra.mxu0 %v145
    %864 = vmatprep.subr.mxu0 0.0
    %865 = vmatpush1.msra.mxu0 %v146
    %866 = vmatprep.subr.mxu0 0.0
    %867 = vmatpush1.msra.mxu0 %v147
    %868 = vmatprep.subr.mxu0 0.0
    %869 = vmatpush1.msra.mxu0 0.0
    %870 = vmatprep.subr.mxu0 0.0
    %871 = vmatpush1.msra.mxu0 0.0
    %872 = vmatprep.subr.mxu0 0.0
    %873 = vmatpush1.msra.mxu0 0.0
    %874 = vmatprep.subr.mxu0 0.0
    %875 = vmatpush1.msra.mxu0 0.0
    %876 = vmatprep.subr.mxu0 0.0
    %877 = vmatpush1.msra.mxu0 0.0
    %878 = vmatprep.subr.mxu0 0.0
    %879 = vmatpush1.msra.mxu0 0.0
    %880 = vmatprep.subr.mxu0 0.0
    %881 = vmatpush1.msra.mxu0 0.0
    %882 = vmatprep.subr.mxu0 0.0
    %883 = vmatpush1.msra.mxu0 0.0
    %884 = vmatprep.subr.mxu0 0.0
    %885 = vmatpush1.msra.mxu0 0.0
    %886 = vmatprep.subr.mxu0 0.0
    %887 = vmatpush1.msra.mxu0 0.0
    %888 = vmatprep.subr.mxu0 0.0
    %889 = vmatpush1.msra.mxu0 0.0
    %890 = vmatprep.subr.mxu0 0.0
    %891 = vmatpush1.msra.mxu0 0.0
    %892 = vmatprep.subr.mxu0 0.0
    %893 = vmatpush1.msra.mxu0 0.0
    %894 = vmatprep.subr.mxu0 0.0
    %895 = vmatpush1.msra.mxu0 0.0
    %896 = vmatprep.subr.mxu0 0.0
    %897 = vmatpush1.msra.mxu0 0.0
    %898 = vmatprep.subr.mxu0 0.0
    %899 = vmatpush1.msra.mxu0 0.0
    %900 = vmatprep.subr.mxu0 0.0
    %901 = vmatpush1.msra.mxu0 0.0
    %902 = vmatprep.subr.mxu0 0.0
    %903 = vmatpush1.msra.mxu0 0.0
    %904 = vmatprep.subr.mxu0 0.0
    %905 = vmatpush1.msra.mxu0 0.0
    %906 = vmatprep.subr.mxu0 0.0
    %907 = vmatpush1.msra.mxu0 0.0
    %908 = vmatprep.subr.mxu0 0.0
    %909 = vmatpush1.msra.mxu0 0.0
    %910 = vmatprep.subr.mxu0 0.0
    %911 = vmatpush1.msra.mxu0 0.0
    %912 = vmatprep.subr.mxu0 0.0
    %913 = vmatpush1.msra.mxu0 0.0
    %914 = vmatprep.subr.mxu0 0.0
    %915 = vmatpush1.msra.mxu0 0.0
    %916 = vmatprep.subr.mxu0 0.0
    %917 = vmatpush1.msra.mxu0 0.0
    %918 = vmatprep.subr.mxu0 0.0
    %919 = vmatpush1.msra.mxu0 0.0
    %920 = vmatprep.subr.mxu0 0.0
    %921 = vmatpush1.msra.mxu0 0.0
    %922 = vmatprep.subr.mxu0 0.0
    %923 = vmatpush1.msra.mxu0 0.0
    %924 = vmatprep.mubr.f32.mxu0 0.0
    %925 = vmatmul.mubr.f32.gmra.mrb[0].mxu0 %v858
    %v926 = vpop.f32.mrb[0].mxu0
    %v927 = vadd.f32 0.0, %v926
    %v928 = vpop.f32.mrb[0].mxu0
    %929 = vdwg.mxu0
    %v931 = vrot.slane %v927, 4
    %v933 = vadd.f32 %v141, %v931
    %v934 = vxor.u32 %v933, 2147483648
    %v935 = vmul.f32 %v934, 1.442695
    %v936 = vpow.pop %v935
    %v937 = vadd.f32 %v936, 1.0
    %v938 = vrcp.pop %v937
    %v939 = vmul.f32 1.0, %v938
    %v940 = vadd.f32 %v927, %v237
    %v942 = vrot.slane %v940, 4
    %943 = vrot.lane.b32.xlu0 %v942, 64
    %v944 = vpop.permute.xlu0 %943
    %v946 = vmul.f32 %v939, %v944
    %948 = vrot.lane.b32.xlu0 %v946, 64
    %v949 = vpop.permute.xlu0 %948
    %v951 = vadd.f32 %v141, %v949
    %v952 = vtanh.pop %v951
    %v954 = vrot.slane %v952, 2
    %v956 = vsub.f32 %v849, %v954
    %v958 = vrot.slane %v956, 6
    %959 = vrot.lane.b32.xlu0 %v958, 96
    %v960 = vpop.permute.xlu0 %959
    %v962 = vmul.f32 %v939, %v960
    %964 = vrot.lane.b32.xlu0 %v962, 32
    %v965 = vpop.permute.xlu0 %964
    %v967 = vadd.f32 %v952, %v965
    %969 = vrot.lane.b32.xlu0 %v967, 64
    %v970 = vpop.permute.xlu0 %969
    %972 = vst.msk [vmem:[#allocation5 + $0x8] sm:$0x30] %vm505, %v970
    %v973 = vrot.slane %v967, 4
    %974 = vrot.lane.b32.xlu0 %v973, 64
    %v975 = vpop.permute.xlu0 %974
    %v976 = vsel %vm150, %v975, 0
    %978 = vmatprep.subr.mxu0 0.0
    %979 = vmatpush1.msra.mxu0 %v144
    %980 = vmatprep.subr.mxu0 0.0
    %981 = vmatpush1.msra.mxu0 %v145
    %982 = vmatprep.subr.mxu0 0.0
    %983 = vmatpush1.msra.mxu0 %v146
    %984 = vmatprep.subr.mxu0 0.0
    %985 = vmatpush1.msra.mxu0 %v147
    %986 = vmatprep.subr.mxu0 0.0
    %987 = vmatpush1.msra.mxu0 0.0
    %988 = vmatprep.subr.mxu0 0.0
    %989 = vmatpush1.msra.mxu0 0.0
    %990 = vmatprep.subr.mxu0 0.0
    %991 = vmatpush1.msra.mxu0 0.0
    %992 = vmatprep.subr.mxu0 0.0
    %993 = vmatpush1.msra.mxu0 0.0
    %994 = vmatprep.subr.mxu0 0.0
    %995 = vmatpush1.msra.mxu0 0.0
    %996 = vmatprep.subr.mxu0 0.0
    %997 = vmatpush1.msra.mxu0 0.0
    %998 = vmatprep.subr.mxu0 0.0
    %999 = vmatpush1.msra.mxu0 0.0
    %1000 = vmatprep.subr.mxu0 0.0
    %1001 = vmatpush1.msra.mxu0 0.0
    %1002 = vmatprep.subr.mxu0 0.0
    %1003 = vmatpush1.msra.mxu0 0.0
    %1004 = vmatprep.subr.mxu0 0.0
    %1005 = vmatpush1.msra.mxu0 0.0
    %1006 = vmatprep.subr.mxu0 0.0
    %1007 = vmatpush1.msra.mxu0 0.0
    %1008 = vmatprep.subr.mxu0 0.0
    %1009 = vmatpush1.msra.mxu0 0.0
    %1010 = vmatprep.subr.mxu0 0.0
    %1011 = vmatpush1.msra.mxu0 0.0
    %1012 = vmatprep.subr.mxu0 0.0
    %1013 = vmatpush1.msra.mxu0 0.0
    %1014 = vmatprep.subr.mxu0 0.0
    %1015 = vmatpush1.msra.mxu0 0.0
    %1016 = vmatprep.subr.mxu0 0.0
    %1017 = vmatpush1.msra.mxu0 0.0
    %1018 = vmatprep.subr.mxu0 0.0
    %1019 = vmatpush1.msra.mxu0 0.0
    %1020 = vmatprep.subr.mxu0 0.0
    %1021 = vmatpush1.msra.mxu0 0.0
    %1022 = vmatprep.subr.mxu0 0.0
    %1023 = vmatpush1.msra.mxu0 0.0
    %1024 = vmatprep.subr.mxu0 0.0
    %1025 = vmatpush1.msra.mxu0 0.0
    %1026 = vmatprep.subr.mxu0 0.0
    %1027 = vmatpush1.msra.mxu0 0.0
    %1028 = vmatprep.subr.mxu0 0.0
    %1029 = vmatpush1.msra.mxu0 0.0
    %1030 = vmatprep.subr.mxu0 0.0
    %1031 = vmatpush1.msra.mxu0 0.0
    %1032 = vmatprep.subr.mxu0 0.0
    %1033 = vmatpush1.msra.mxu0 0.0
    %1034 = vmatprep.subr.mxu0 0.0
    %1035 = vmatpush1.msra.mxu0 0.0
    %1036 = vmatprep.subr.mxu0 0.0
    %1037 = vmatpush1.msra.mxu0 0.0
    %1038 = vmatprep.subr.mxu0 0.0
    %1039 = vmatpush1.msra.mxu0 0.0
    %1040 = vmatprep.subr.mxu0 0.0
    %1041 = vmatpush1.msra.mxu0 0.0
    %1042 = vmatprep.mubr.f32.mxu0 0.0
    %1043 = vmatmul.mubr.f32.gmra.mrb[0].mxu0 %v976
    %v1044 = vpop.f32.mrb[0].mxu0
    %v1045 = vadd.f32 0.0, %v1044
    %v1046 = vpop.f32.mrb[0].mxu0
    %1047 = vdwg.mxu0
    %v1049 = vrot.slane %v1045, 2
    %v1051 = vadd.f32 %v141, %v1049
    %v1052 = vxor.u32 %v1051, 2147483648
    %v1053 = vmul.f32 %v1052, 1.442695
    %v1054 = vpow.pop %v1053
    %v1055 = vadd.f32 %v1054, 1.0
    %v1056 = vrcp.pop %v1055
    %v1057 = vmul.f32 1.0, %v1056
    %v1058 = vadd.f32 %v1045, %v237
    %v1060 = vrot.slane %v1058, 2
    %1061 = vrot.lane.b32.xlu0 %v1060, 64
    %v1062 = vpop.permute.xlu0 %1061
    %v1064 = vmul.f32 %v1057, %v1062
    %1066 = vrot.lane.b32.xlu0 %v1064, 64
    %v1067 = vpop.permute.xlu0 %1066
    %v1069 = vadd.f32 %v141, %v1067
    %v1070 = vtanh.pop %v1069
    %v1072 = vrot.slane %v1070, 2
    %v1074 = vsub.f32 %v967, %v1072
    %v1076 = vrot.slane %v1074, 6
    %1077 = vrot.lane.b32.xlu0 %v1076, 96
    %v1078 = vpop.permute.xlu0 %1077
    %v1080 = vmul.f32 %v1057, %v1078
    %1082 = vrot.lane.b32.xlu0 %v1080, 32
    %v1083 = vpop.permute.xlu0 %1082
    %v1085 = vadd.f32 %v1070, %v1083
    %1087 = vrot.lane.b32.xlu0 %v1085, 64
    %v1088 = vpop.permute.xlu0 %1087
    %1090 = vst.msk [vmem:[#allocation5 + $0x8] sm:$0xc0] %vm624, %v1088
    %1091 = vst.msk [vmem:[#allocation6 - $0x6] sm:$0xc0] %vm624, %v1088
    // Predicated region
    $region34: #{tpu_custom_call.1} parent=1 // pred_check
      _
    $region35: #{tpu_custom_call.1} parent=1 // pred_check_branch
      %1093 = sbr.rel (0) target = $region37
    $region36: #{tpu_custom_call.1} parent=1 // pred_region
      %s1095 = ssub.s32 256, 256
      %1096 = vsyncadd [#allocation4], %s1095
      %s1097 = sshll.u32 [#allocation5], 4
      %s1098 = int_to_ptr.vmem [resolvable:$true] %s1097
      %1103 = dma.vmem_to_hbm [thread:$0]  %s1098, 256, %s6, [#allocation4], 128, 128, 8
    $region37: #{tpu_custom_call.1} parent=1 // pred_fallthru
      _
    // Predicated region
    $region38: #{tpu_custom_call.1} parent=1 // pred_check
      _
    $region39: #{tpu_custom_call.1} parent=1 // pred_check_branch
      %1105 = sbr.rel (0) target = $region41
    $region40: #{tpu_custom_call.1} parent=1 // pred_region
      %s1107 = ssub.s32 32, 32
      %1108 = vsyncadd [#allocation7], %s1107
      %s1110 = sshll.u32 [#allocation6], 4
      %s1111 = int_to_ptr.vmem [resolvable:$true] %s1110
      %1113 = dma.vmem_to_hbm [thread:$0]  %s1111, 32, %s7, [#allocation7]
    $region41: #{tpu_custom_call.1} parent=1 // pred_fallthru
      _
    // Predicated region
    $region42: #{tpu_custom_call.1} parent=1 // pred_check
      _
    $region43: #{tpu_custom_call.1} parent=1 // pred_check_branch
      %1115 = sbr.rel (0) target = $region45
    $region44: #{tpu_custom_call.1} parent=1 // pred_region
      %1116 = dma.done [#allocation4], 256
    $region45: #{tpu_custom_call.1} parent=1 // pred_fallthru
      _
    // Predicated region
    $region46: #{tpu_custom_call.1} parent=1 // pred_check
      _
    $region47: #{tpu_custom_call.1} parent=1 // pred_check_branch
      %1118 = sbr.rel (0) target = $region49
    $region48: #{tpu_custom_call.1} parent=1 // pred_region
      %1119 = dma.done [#allocation7], 32
    $region49: #{tpu_custom_call.1} parent=1 // pred_fallthru
      _
    %1120 = vsyncpa [#allocation3], 1
    %1121 = vsyncpa [#allocation4], 1
    %1122 = vsyncpa [#allocation7], 1

</llo_original>
